<compile_context>
chip_gen: v6e
topology: v6e:2x2x1
jax: 0.10.0
libtpu: 0.0.40
codegen_flags: <defaults>
</compile_context>

<pallas_src>
import jax
import jax.numpy as jnp
from jax.experimental import pallas as pl
from jax.experimental.pallas import tpu as pltpu

INPUT_DIM = 20      # source vocab
OUTPUT_DIM = 22     # target vocab (decoder.output_dim)
EMB_DIM = 32
HID_DIM = 32
VOCAB_PAD = 128     # lane-dense padded target vocab


# ----------------------------------------------------------------------------
# Fused encoder kernel: whole source sequence in one grid-over-time kernel.
# ----------------------------------------------------------------------------
def _encoder_kernel(x_ref, w_ref, b_ref, h_ref, c_ref):
    # x_ref: [B, E] (timestep t), w_ref: [E+H, 4H], b_ref: [1, 4H]
    # h_ref / c_ref: [B, H] output blocks, VMEM-resident across the grid.
    t = pl.program_id(0)
    H = h_ref.shape[-1]

    @pl.when(t == 0)
    def _():
        h_ref[...] = jnp.zeros_like(h_ref)
        c_ref[...] = jnp.zeros_like(c_ref)

    x = x_ref[...]
    h = h_ref[...]
    c = c_ref[...]
    xh = jnp.concatenate([x, h], axis=-1)                       # [B, E+H]
    gates = (jnp.dot(xh, w_ref[...], preferred_element_type=jnp.float32)
             + b_ref[...])                                       # [B, 4H]
    i_g = jax.nn.sigmoid(gates[:, 0 * H:1 * H])
    f_g = jax.nn.sigmoid(gates[:, 1 * H:2 * H])
    g_g = jnp.tanh(gates[:, 2 * H:3 * H])
    o_g = jax.nn.sigmoid(gates[:, 3 * H:4 * H])
    c_new = f_g * c + i_g * g_g
    h_new = o_g * jnp.tanh(c_new)
    c_ref[...] = c_new
    h_ref[...] = h_new


def encoder_run(x_emb, w, b):
    S, B, E = x_emb.shape
    H = HID_DIM
    return pl.pallas_call(
        _encoder_kernel,
        out_shape=(jax.ShapeDtypeStruct((B, H), jnp.float32),
                   jax.ShapeDtypeStruct((B, H), jnp.float32)),
        grid_spec=pltpu.PrefetchScalarGridSpec(
            num_scalar_prefetch=0,
            grid=(S,),
            in_specs=[pl.BlockSpec((None, B, E), lambda t: (t, 0, 0)),
                      pl.BlockSpec(w.shape, lambda t: (0, 0)),
                      pl.BlockSpec(b.shape, lambda t: (0, 0))],
            out_specs=(pl.BlockSpec((B, H), lambda t: (0, 0)),
                       pl.BlockSpec((B, H), lambda t: (0, 0))),
        ),
        compiler_params=pltpu.CompilerParams(
            dimension_semantics=("arbitrary",)),   # serial recurrence
    )(x_emb, w, b)


# ----------------------------------------------------------------------------
# Fused decoder kernel: LSTM cell + vocab projection + argmax + token feedback.
# ----------------------------------------------------------------------------
def _decoder_kernel(tgt_ref, tf_ref,                    # scalar prefetch (SMEM)
                    h0_ref, c0_ref, emb_ref, w_ref, b_ref, fcw_ref, fcb_ref,
                    out_ref,
                    h_scr, c_scr, oh_scr):
    g = pl.program_id(0)                                # decode step t = g + 1
    B, H = h_scr.shape
    Vp = oh_scr.shape[-1]
    lane_row = jax.lax.broadcasted_iota(jnp.int32, (1, Vp), 1)

    @pl.when(g == 0)
    def _():
        h_scr[...] = h0_ref[...]
        c_scr[...] = c0_ref[...]
        # first decoder input = target[0]  (as a one-hot vector)
        rows = [(lane_row == tgt_ref[0, b]).astype(jnp.float32)
                for b in range(B)]
        oh_scr[...] = jnp.concatenate(rows, axis=0)

    # embedding lookup via one-hot matmul (MXU-friendly, no dynamic gather)
    x = jnp.dot(oh_scr[...], emb_ref[...],
                preferred_element_type=jnp.float32)              # [B, E]
    h = h_scr[...]
    c = c_scr[...]
    xh = jnp.concatenate([x, h], axis=-1)                        # [B, E+H]
    gates = (jnp.dot(xh, w_ref[...], preferred_element_type=jnp.float32)
             + b_ref[...])                                        # [B, 4H]
    i_g = jax.nn.sigmoid(gates[:, 0 * H:1 * H])
    f_g = jax.nn.sigmoid(gates[:, 1 * H:2 * H])
    g_g = jnp.tanh(gates[:, 2 * H:3 * H])
    o_g = jax.nn.sigmoid(gates[:, 3 * H:4 * H])
    c_new = f_g * c + i_g * g_g
    h_new = o_g * jnp.tanh(c_new)
    c_scr[...] = c_new
    h_scr[...] = h_new

    # lane-dense (padded) vocab projection; pad columns carry bias -1e9
    logits = (jnp.dot(h_new, fcw_ref[...], preferred_element_type=jnp.float32)
              + fcb_ref[...])                                     # [B, Vp]
    out_ref[...] = logits

    # in-kernel argmax (first max, matches torch.argmax tie-breaking)
    lane = jax.lax.broadcasted_iota(jnp.int32, (B, Vp), 1)
    m = jnp.max(logits, axis=-1, keepdims=True)
    cand = jnp.where(logits == m, lane, Vp)
    idx = jnp.min(cand, axis=-1, keepdims=True)                   # [B, 1]
    top_oh = (lane == idx).astype(jnp.float32)                    # [B, Vp]

    # teacher-forced alternative: target[t]
    rows = [(lane_row == tgt_ref[g + 1, b]).astype(jnp.float32)
            for b in range(B)]
    tgt_oh = jnp.concatenate(rows, axis=0)                        # [B, Vp]

    tf = (tf_ref[g + 1] > 0).astype(jnp.float32)                  # scalar blend
    oh_scr[...] = tf * tgt_oh + (1.0 - tf) * top_oh


def decoder_run(target, tf_mask, h0, c0, emb_pad, w, b, fcw_pad, fcb_pad):
    T, B = target.shape
    H = HID_DIM
    Vp = VOCAB_PAD
    return pl.pallas_call(
        _decoder_kernel,
        out_shape=jax.ShapeDtypeStruct((T - 1, B, Vp), jnp.float32),
        grid_spec=pltpu.PrefetchScalarGridSpec(
            num_scalar_prefetch=2,
            grid=(T - 1,),
            in_specs=[pl.BlockSpec(h0.shape, lambda g, tgt, tf: (0, 0)),
                      pl.BlockSpec(c0.shape, lambda g, tgt, tf: (0, 0)),
                      pl.BlockSpec(emb_pad.shape, lambda g, tgt, tf: (0, 0)),
                      pl.BlockSpec(w.shape, lambda g, tgt, tf: (0, 0)),
                      pl.BlockSpec(b.shape, lambda g, tgt, tf: (0, 0)),
                      pl.BlockSpec(fcw_pad.shape, lambda g, tgt, tf: (0, 0)),
                      pl.BlockSpec(fcb_pad.shape, lambda g, tgt, tf: (0, 0))],
            out_specs=pl.BlockSpec((None, B, Vp),
                                   lambda g, tgt, tf: (g, 0, 0)),
            scratch_shapes=[pltpu.VMEM((B, H), jnp.float32),   # h
                            pltpu.VMEM((B, H), jnp.float32),   # c
                            pltpu.VMEM((B, Vp), jnp.float32)], # fed-back one-hot
        ),
        compiler_params=pltpu.CompilerParams(
            dimension_semantics=("arbitrary",)),   # serial recurrence
    )(target, tf_mask, h0, c0, emb_pad, w, b, fcw_pad, fcb_pad)


# ----------------------------------------------------------------------------
# Parameters (deterministic init, PyTorch-like shapes; gate order i, f, g, o)
# ----------------------------------------------------------------------------
def init_params(key):
    ks = jax.random.split(key, 14)
    u = lambda k, shape, s: jax.random.uniform(k, shape, jnp.float32, -s, s)
    scale = 1.0 / float(jnp.sqrt(HID_DIM))

    # encoder LSTM (pre-transposed [in, 4H]); fuse [W_ih; W_hh] -> [E+H, 4H]
    enc_w_ih = u(ks[1], (EMB_DIM, 4 * HID_DIM), scale)
    enc_w_hh = u(ks[2], (HID_DIM, 4 * HID_DIM), scale)
    enc_b = u(ks[3], (1, 4 * HID_DIM), scale) + u(ks[10], (1, 4 * HID_DIM), scale)

    # decoder LSTM
    dec_w_ih = u(ks[5], (EMB_DIM, 4 * HID_DIM), scale)
    dec_w_hh = u(ks[6], (HID_DIM, 4 * HID_DIM), scale)
    dec_b = u(ks[7], (1, 4 * HID_DIM), scale) + u(ks[11], (1, 4 * HID_DIM), scale)

    # decoder embedding padded to VOCAB_PAD rows (one-hot matmul lookup)
    dec_emb = u(ks[4], (OUTPUT_DIM, EMB_DIM), 0.1)
    dec_emb_pad = jnp.zeros((VOCAB_PAD, EMB_DIM), jnp.float32)
    dec_emb_pad = dec_emb_pad.at[:OUTPUT_DIM].set(dec_emb)

    # vocab projection padded to VOCAB_PAD lanes; pad bias = -1e9
    fc_w = u(ks[8], (HID_DIM, OUTPUT_DIM), scale)
    fc_b = u(ks[9], (1, OUTPUT_DIM), scale)
    fc_w_pad = jnp.zeros((HID_DIM, VOCAB_PAD), jnp.float32).at[:, :OUTPUT_DIM].set(fc_w)
    fc_b_pad = jnp.full((1, VOCAB_PAD), -1e9, jnp.float32).at[:, :OUTPUT_DIM].set(fc_b)

    return {
        "enc_emb": u(ks[0], (INPUT_DIM, EMB_DIM), 0.1),
        "enc_w":   jnp.concatenate([enc_w_ih, enc_w_hh], axis=0),   # [E+H, 4H]
        "enc_b":   enc_b,
        "dec_emb_pad": dec_emb_pad,                                  # [Vp, E]
        "dec_w":   jnp.concatenate([dec_w_ih, dec_w_hh], axis=0),    # [E+H, 4H]
        "dec_b":   dec_b,
        "dec_fc_w_pad": fc_w_pad,                                    # [H, Vp]
        "dec_fc_b_pad": fc_b_pad,                                    # [1, Vp]
    }


# ----------------------------------------------------------------------------
# Seq2Seq forward (mirrors the PyTorch module)
# ----------------------------------------------------------------------------
def seq2seq_forward(params, source, target, tf_mask):
    """source/target: [len, batch] int32; tf_mask: [trg_len] int32 (teacher
    forcing decisions for steps 1..trg_len-1). Returns [trg_len, B, OUTPUT_DIM]."""
    T, B = target.shape

    # encoder: pre-gather embeddings once, then one fused grid-over-time kernel
    src_emb = jnp.take(params["enc_emb"], source, axis=0)        # [S, B, E]
    hidden, cell = encoder_run(src_emb, params["enc_w"], params["enc_b"])

    # decoder: one fused kernel over the whole decode loop
    logits_pad = decoder_run(target, tf_mask, hidden, cell,
                             params["dec_emb_pad"], params["dec_w"],
                             params["dec_b"], params["dec_fc_w_pad"],
                             params["dec_fc_b_pad"])             # [T-1, B, Vp]

    logits = logits_pad[:, :, :OUTPUT_DIM]                       # drop pad lanes
    zeros0 = jnp.zeros((1, B, OUTPUT_DIM), jnp.float32)          # outputs[0] = 0
    return jnp.concatenate([zeros0, logits], axis=0)


# ----------------------------------------------------------------------------
if __name__ == "__main__":
    key = jax.random.PRNGKey(0)
    k_p, k_src, k_trg, k_tf = jax.random.split(key, 4)
    params = init_params(k_p)

    SRC_LEN, TRG_LEN, BATCH = 8, 8, 2
    source = jax.random.randint(k_src, (SRC_LEN, BATCH), 0, INPUT_DIM,
                                dtype=jnp.int32)
    target = jax.random.randint(k_trg, (TRG_LEN, BATCH), 0, OUTPUT_DIM,
                                dtype=jnp.int32)
    # precomputed per-step teacher-forcing decisions (ratio = 0.5)
    tf_mask = jax.random.bernoulli(k_tf, 0.5, (TRG_LEN,)).astype(jnp.int32)

    fwd = jax.jit(seq2seq_forward)
    outputs = fwd(params, source, target, tf_mask)
    outputs = jax.block_until_ready(outputs)

    assert outputs.shape == (TRG_LEN, BATCH, OUTPUT_DIM)
    assert bool(jnp.all(jnp.isfinite(outputs)))
    assert bool(jnp.all(outputs[0] == 0.0))
    print("KERNEL_OK")
</pallas_src>

<mosaic_0001>
module attributes {stable_mosaic.version = 11 : i64} {
  func.func @_decoder_kernel(%arg0: i32, %arg1: memref<8x2xi32, #tpu.memory_space<smem>>, %arg2: memref<8xi32, #tpu.memory_space<smem>>, %arg3: memref<2x32xf32, #tpu.memory_space<vmem>>, %arg4: memref<2x32xf32, #tpu.memory_space<vmem>>, %arg5: memref<128x32xf32, #tpu.memory_space<vmem>>, %arg6: memref<64x128xf32, #tpu.memory_space<vmem>>, %arg7: memref<1x128xf32, #tpu.memory_space<vmem>>, %arg8: memref<32x128xf32, #tpu.memory_space<vmem>>, %arg9: memref<1x128xf32, #tpu.memory_space<vmem>>, %arg10: memref<1x2x128xf32, #tpu.memory_space<vmem>>, %arg11: memref<2x32xf32, #tpu.memory_space<vmem>>, %arg12: memref<2x32xf32, #tpu.memory_space<vmem>>, %arg13: memref<2x128xf32, #tpu.memory_space<vmem>>) attributes {dimension_semantics = [#tpu.dimension_semantics<arbitrary>], iteration_bounds = array<i64: 7>, scalar_prefetch = 2 : i64, scratch_operands = 3 : i64, tpu.core_type = #tpu.core_type<tc>, window_params = [{pipeline_mode = #tpu.pipeline_mode<synchronous>, transform_indices = @transform_0, window_bounds = array<i64: 2, 32>}, {pipeline_mode = #tpu.pipeline_mode<synchronous>, transform_indices = @transform_1, window_bounds = array<i64: 2, 32>}, {pipeline_mode = #tpu.pipeline_mode<synchronous>, transform_indices = @transform_2, window_bounds = array<i64: 128, 32>}, {pipeline_mode = #tpu.pipeline_mode<synchronous>, transform_indices = @transform_3, window_bounds = array<i64: 64, 128>}, {pipeline_mode = #tpu.pipeline_mode<synchronous>, transform_indices = @transform_4, window_bounds = array<i64: 1, 128>}, {pipeline_mode = #tpu.pipeline_mode<synchronous>, transform_indices = @transform_5, window_bounds = array<i64: 32, 128>}, {pipeline_mode = #tpu.pipeline_mode<synchronous>, transform_indices = @transform_6, window_bounds = array<i64: 1, 128>}, {transform_indices = @transform_7, window_bounds = array<i64: 1, 2, 128>}]} {
    %0 = tpu.iota {dimensions = array<i32: 1>} : vector<1x128xi32>
    %c0_i32 = arith.constant 0 : i32
    %1 = arith.cmpi eq, %arg0, %c0_i32 : i32
    %2 = arith.extui %1 : i1 to i32
    %c0_i32_0 = arith.constant 0 : i32
    %3 = arith.cmpi ne, %2, %c0_i32_0 : i32
    scf.if %3 {
      %c0_37 = arith.constant 0 : index
      %c0_38 = arith.constant 0 : index
      %91 = vector.load %arg3[%c0_37, %c0_38] : memref<2x32xf32, #tpu.memory_space<vmem>>, vector<2x32xf32>
      %c0_39 = arith.constant 0 : index
      %c0_40 = arith.constant 0 : index
      %92 = vector.load %arg11[%c0_39, %c0_40] : memref<2x32xf32, #tpu.memory_space<vmem>>, vector<2x32xf32>
      tpu.vector_store %arg11[%c0_39, %c0_40], %91 {strides = array<i32>} : memref<2x32xf32, #tpu.memory_space<vmem>>, vector<2x32xf32>,
      %c0_41 = arith.constant 0 : index
      %c0_42 = arith.constant 0 : index
      %93 = vector.load %arg4[%c0_41, %c0_42] : memref<2x32xf32, #tpu.memory_space<vmem>>, vector<2x32xf32>
      %c0_43 = arith.constant 0 : index
      %c0_44 = arith.constant 0 : index
      %94 = vector.load %arg12[%c0_43, %c0_44] : memref<2x32xf32, #tpu.memory_space<vmem>>, vector<2x32xf32>
      tpu.vector_store %arg12[%c0_43, %c0_44], %93 {strides = array<i32>} : memref<2x32xf32, #tpu.memory_space<vmem>>, vector<2x32xf32>,
      %c0_45 = arith.constant 0 : index
      %c0_46 = arith.constant 0 : index
      %95 = memref.load %arg1[%c0_45, %c0_46] : memref<8x2xi32, #tpu.memory_space<smem>>
      %96 = vector.broadcast %95 : i32 to vector<1x128xi32>
      %97 = arith.cmpi eq, %0, %96 : vector<1x128xi32>
      %98 = arith.extui %97 : vector<1x128xi1> to vector<1x128xi32>
      %99 = arith.sitofp %98 : vector<1x128xi32> to vector<1x128xf32>
      %c0_47 = arith.constant 0 : index
      %c1_48 = arith.constant 1 : index
      %100 = memref.load %arg1[%c0_47, %c1_48] : memref<8x2xi32, #tpu.memory_space<smem>>
      %101 = vector.broadcast %100 : i32 to vector<1x128xi32>
      %102 = arith.cmpi eq, %0, %101 : vector<1x128xi32>
      %103 = arith.extui %102 : vector<1x128xi1> to vector<1x128xi32>
      %104 = arith.sitofp %103 : vector<1x128xi32> to vector<1x128xf32>
      %105 = tpu.concatenate %99, %104 in 0 : vector<1x128xf32>, vector<1x128xf32> -> vector<2x128xf32>
      %c0_49 = arith.constant 0 : index
      %c0_50 = arith.constant 0 : index
      %106 = vector.load %arg13[%c0_49, %c0_50] : memref<2x128xf32, #tpu.memory_space<vmem>>, vector<2x128xf32>
      tpu.vector_store %arg13[%c0_49, %c0_50], %105 {strides = array<i32>} : memref<2x128xf32, #tpu.memory_space<vmem>>, vector<2x128xf32>,
    } else {
    }
    %c0 = arith.constant 0 : index
    %c0_1 = arith.constant 0 : index
    %4 = vector.load %arg13[%c0, %c0_1] : memref<2x128xf32, #tpu.memory_space<vmem>>, vector<2x128xf32>
    %c0_2 = arith.constant 0 : index
    %c0_3 = arith.constant 0 : index
    %5 = vector.load %arg5[%c0_2, %c0_3] : memref<128x32xf32, #tpu.memory_space<vmem>>, vector<128x32xf32>
    %cst = arith.constant dense<0.000000e+00> : vector<2x32xf32>
    %6 = tpu.matmul %4, %5, %cst {dimension_numbers = #tpu.dot_dimension_numbers<[1], [0], [0], [1], [0, 0, 1, 1], [], []>} : vector<2x128xf32>, vector<128x32xf32>, vector<2x32xf32> -> vector<2x32xf32>
    %c0_4 = arith.constant 0 : index
    %c0_5 = arith.constant 0 : index
    %7 = vector.load %arg11[%c0_4, %c0_5] : memref<2x32xf32, #tpu.memory_space<vmem>>, vector<2x32xf32>
    %c0_6 = arith.constant 0 : index
    %c0_7 = arith.constant 0 : index
    %8 = vector.load %arg12[%c0_6, %c0_7] : memref<2x32xf32, #tpu.memory_space<vmem>>, vector<2x32xf32>
    %9 = tpu.concatenate %6, %7 in 1 : vector<2x32xf32>, vector<2x32xf32> -> vector<2x64xf32>
    %c0_8 = arith.constant 0 : index
    %c0_9 = arith.constant 0 : index
    %10 = vector.load %arg6[%c0_8, %c0_9] : memref<64x128xf32, #tpu.memory_space<vmem>>, vector<64x128xf32>
    %cst_10 = arith.constant dense<0.000000e+00> : vector<2x128xf32>
    %11 = tpu.matmul %9, %10, %cst_10 {dimension_numbers = #tpu.dot_dimension_numbers<[1], [0], [0], [1], [0, 0, 1, 1], [], []>} : vector<2x64xf32>, vector<64x128xf32>, vector<2x128xf32> -> vector<2x128xf32>
    %c0_11 = arith.constant 0 : index
    %c0_12 = arith.constant 0 : index
    %12 = vector.load %arg7[%c0_11, %c0_12] : memref<1x128xf32, #tpu.memory_space<vmem>>, vector<1x128xf32>
    %13 = vector.broadcast %12 : vector<1x128xf32> to vector<2x128xf32>
    %14 = arith.addf %11, %13 : vector<2x128xf32>
    %15 = vector.extract_strided_slice %14 {offsets = [0, 0], sizes = [2, 32], strides = [1, 1]} : vector<2x128xf32> to vector<2x32xf32>
    %16 = arith.negf %15 : vector<2x32xf32>
    %17 = math.exp %16 : vector<2x32xf32>
    %cst_13 = arith.constant 1.000000e+00 : f32
    %18 = vector.broadcast %cst_13 : f32 to vector<2x32xf32>
    %19 = arith.addf %18, %17 : vector<2x32xf32>
    %20 = arith.divf %18, %19 : vector<2x32xf32>
    %21 = vector.extract_strided_slice %14 {offsets = [0, 32], sizes = [2, 32], strides = [1, 1]} : vector<2x128xf32> to vector<2x32xf32>
    %22 = arith.negf %21 : vector<2x32xf32>
    %23 = math.exp %22 : vector<2x32xf32>
    %cst_14 = arith.constant 1.000000e+00 : f32
    %24 = vector.broadcast %cst_14 : f32 to vector<2x32xf32>
    %25 = arith.addf %24, %23 : vector<2x32xf32>
    %26 = arith.divf %24, %25 : vector<2x32xf32>
    %27 = vector.extract_strided_slice %14 {offsets = [0, 64], sizes = [2, 32], strides = [1, 1]} : vector<2x128xf32> to vector<2x32xf32>
    %28 = math.tanh %27 : vector<2x32xf32>
    %29 = vector.extract_strided_slice %14 {offsets = [0, 96], sizes = [2, 32], strides = [1, 1]} : vector<2x128xf32> to vector<2x32xf32>
    %30 = arith.negf %29 : vector<2x32xf32>
    %31 = math.exp %30 : vector<2x32xf32>
    %cst_15 = arith.constant 1.000000e+00 : f32
    %32 = vector.broadcast %cst_15 : f32 to vector<2x32xf32>
    %33 = arith.addf %32, %31 : vector<2x32xf32>
    %34 = arith.divf %32, %33 : vector<2x32xf32>
    %35 = arith.mulf %26, %8 : vector<2x32xf32>
    %36 = arith.mulf %20, %28 : vector<2x32xf32>
    %37 = arith.addf %35, %36 : vector<2x32xf32>
    %38 = math.tanh %37 : vector<2x32xf32>
    %39 = arith.mulf %34, %38 : vector<2x32xf32>
    %c0_16 = arith.constant 0 : index
    %c0_17 = arith.constant 0 : index
    %40 = vector.load %arg12[%c0_16, %c0_17] : memref<2x32xf32, #tpu.memory_space<vmem>>, vector<2x32xf32>
    tpu.vector_store %arg12[%c0_16, %c0_17], %37 {strides = array<i32>} : memref<2x32xf32, #tpu.memory_space<vmem>>, vector<2x32xf32>,
    %c0_18 = arith.constant 0 : index
    %c0_19 = arith.constant 0 : index
    %41 = vector.load %arg11[%c0_18, %c0_19] : memref<2x32xf32, #tpu.memory_space<vmem>>, vector<2x32xf32>
    tpu.vector_store %arg11[%c0_18, %c0_19], %39 {strides = array<i32>} : memref<2x32xf32, #tpu.memory_space<vmem>>, vector<2x32xf32>,
    %c0_20 = arith.constant 0 : index
    %c0_21 = arith.constant 0 : index
    %42 = vector.load %arg8[%c0_20, %c0_21] : memref<32x128xf32, #tpu.memory_space<vmem>>, vector<32x128xf32>
    %cst_22 = arith.constant dense<0.000000e+00> : vector<2x128xf32>
    %43 = tpu.matmul %39, %42, %cst_22 {dimension_numbers = #tpu.dot_dimension_numbers<[1], [0], [0], [1], [0, 0, 1, 1], [], []>} : vector<2x32xf32>, vector<32x128xf32>, vector<2x128xf32> -> vector<2x128xf32>
    %c0_23 = arith.constant 0 : index
    %c0_24 = arith.constant 0 : index
    %44 = vector.load %arg9[%c0_23, %c0_24] : memref<1x128xf32, #tpu.memory_space<vmem>>, vector<1x128xf32>
    %45 = vector.broadcast %44 : vector<1x128xf32> to vector<2x128xf32>
    %46 = arith.addf %43, %45 : vector<2x128xf32>
    %c0_25 = arith.constant 0 : index
    %c0_26 = arith.constant 0 : index
    %c0_27 = arith.constant 0 : index
    %47 = vector.load %arg10[%c0_25, %c0_26, %c0_27] : memref<1x2x128xf32, #tpu.memory_space<vmem>>, vector<1x2x128xf32>
    %48 = vector.shape_cast %47 : vector<1x2x128xf32> to vector<2x128xf32>
    %49 = vector.shape_cast %46 : vector<2x128xf32> to vector<1x2x128xf32>
    tpu.vector_store %arg10[%c0_25, %c0_26, %c0_27], %49 {strides = array<i32>} : memref<1x2x128xf32, #tpu.memory_space<vmem>>, vector<1x2x128xf32>,
    %50 = tpu.iota {dimensions = array<i32: 1>} : vector<2x128xi32>
    %cst_28 = arith.constant dense<0xFF800000> : vector<2xf32>
    %51 = vector.multi_reduction <maximumf>, %46, %cst_28 [1] : vector<2x128xf32> to vector<2xf32>
    %52 = vector.shape_cast %51 : vector<2xf32> to vector<2x1xf32>
    %53 = vector.broadcast %52 : vector<2x1xf32> to vector<2x128xf32>
    %54 = arith.cmpf oeq, %46, %53 : vector<2x128xf32>
    %c128_i32 = arith.constant 128 : i32
    %55 = vector.broadcast %c128_i32 : i32 to vector<2x128xi32>
    %56 = arith.select %54, %50, %55 : vector<2x128xi1>, vector<2x128xi32>
    %cst_29 = arith.constant dense<2147483647> : vector<2xi32>
    %57 = vector.multi_reduction <minsi>, %56, %cst_29 [1] : vector<2x128xi32> to vector<2xi32>
    %58 = vector.shape_cast %57 : vector<2xi32> to vector<2x1xi32>
    %59 = vector.broadcast %58 : vector<2x1xi32> to vector<2x128xi32>
    %60 = arith.cmpi eq, %50, %59 : vector<2x128xi32>
    %61 = arith.extui %60 : vector<2x128xi1> to vector<2x128xi32>
    %62 = arith.sitofp %61 : vector<2x128xi32> to vector<2x128xf32>
    %c1_i32 = arith.constant 1 : i32
    %63 = arith.addi %arg0, %c1_i32 : i32
    %64 = arith.index_cast %63 : i32 to index
    %c0_30 = arith.constant 0 : index
    %65 = memref.load %arg1[%64, %c0_30] : memref<8x2xi32, #tpu.memory_space<smem>>
    %66 = vector.broadcast %65 : i32 to vector<1x128xi32>
    %67 = arith.cmpi eq, %0, %66 : vector<1x128xi32>
    %68 = arith.extui %67 : vector<1x128xi1> to vector<1x128xi32>
    %69 = arith.sitofp %68 : vector<1x128xi32> to vector<1x128xf32>
    %c1_i32_31 = arith.constant 1 : i32
    %70 = arith.addi %arg0, %c1_i32_31 : i32
    %71 = arith.index_cast %70 : i32 to index
    %c1 = arith.constant 1 : index
    %72 = memref.load %arg1[%71, %c1] : memref<8x2xi32, #tpu.memory_space<smem>>
    %73 = vector.broadcast %72 : i32 to vector<1x128xi32>
    %74 = arith.cmpi eq, %0, %73 : vector<1x128xi32>
    %75 = arith.extui %74 : vector<1x128xi1> to vector<1x128xi32>
    %76 = arith.sitofp %75 : vector<1x128xi32> to vector<1x128xf32>
    %77 = tpu.concatenate %69, %76 in 0 : vector<1x128xf32>, vector<1x128xf32> -> vector<2x128xf32>
    %c1_i32_32 = arith.constant 1 : i32
    %78 = arith.addi %arg0, %c1_i32_32 : i32
    %79 = arith.index_cast %78 : i32 to index
    %80 = memref.load %arg2[%79] : memref<8xi32, #tpu.memory_space<smem>>
    %c0_i32_33 = arith.constant 0 : i32
    %81 = arith.cmpi sgt, %80, %c0_i32_33 : i32
    %82 = arith.extui %81 : i1 to i32
    %83 = arith.sitofp %82 : i32 to f32
    %84 = vector.broadcast %83 : f32 to vector<2x128xf32>
    %85 = arith.mulf %84, %77 : vector<2x128xf32>
    %cst_34 = arith.constant 1.000000e+00 : f32
    %86 = arith.subf %cst_34, %83 : f32
    %87 = vector.broadcast %86 : f32 to vector<2x128xf32>
    %88 = arith.mulf %87, %62 : vector<2x128xf32>
    %89 = arith.addf %85, %88 : vector<2x128xf32>
    %c0_35 = arith.constant 0 : index
    %c0_36 = arith.constant 0 : index
    %90 = vector.load %arg13[%c0_35, %c0_36] : memref<2x128xf32, #tpu.memory_space<vmem>>, vector<2x128xf32>
    tpu.vector_store %arg13[%c0_35, %c0_36], %89 {strides = array<i32>} : memref<2x128xf32, #tpu.memory_space<vmem>>, vector<2x128xf32>,
    return
  }
  func.func @transform_0(%arg0: i32, %arg1: memref<8x2xi32, #tpu.memory_space<smem>>, %arg2: memref<8xi32, #tpu.memory_space<smem>>) -> (i32, i32) {
    %c0_i32 = arith.constant 0 : i32
    %c0_i32_0 = arith.constant 0 : i32
    %c0_i32_1 = arith.constant 0 : i32
    return %c0_i32, %c0_i32_0 : i32, i32
  }
  func.func @transform_1(%arg0: i32, %arg1: memref<8x2xi32, #tpu.memory_space<smem>>, %arg2: memref<8xi32, #tpu.memory_space<smem>>) -> (i32, i32) {
    %c0_i32 = arith.constant 0 : i32
    %c0_i32_0 = arith.constant 0 : i32
    %c0_i32_1 = arith.constant 0 : i32
    return %c0_i32, %c0_i32_0 : i32, i32
  }
  func.func @transform_2(%arg0: i32, %arg1: memref<8x2xi32, #tpu.memory_space<smem>>, %arg2: memref<8xi32, #tpu.memory_space<smem>>) -> (i32, i32) {
    %c0_i32 = arith.constant 0 : i32
    %c0_i32_0 = arith.constant 0 : i32
    %c0_i32_1 = arith.constant 0 : i32
    return %c0_i32, %c0_i32_0 : i32, i32
  }
  func.func @transform_3(%arg0: i32, %arg1: memref<8x2xi32, #tpu.memory_space<smem>>, %arg2: memref<8xi32, #tpu.memory_space<smem>>) -> (i32, i32) {
    %c0_i32 = arith.constant 0 : i32
    %c0_i32_0 = arith.constant 0 : i32
    %c0_i32_1 = arith.constant 0 : i32
    return %c0_i32, %c0_i32_0 : i32, i32
  }
  func.func @transform_4(%arg0: i32, %arg1: memref<8x2xi32, #tpu.memory_space<smem>>, %arg2: memref<8xi32, #tpu.memory_space<smem>>) -> (i32, i32) {
    %c0_i32 = arith.constant 0 : i32
    %c0_i32_0 = arith.constant 0 : i32
    %c0_i32_1 = arith.constant 0 : i32
    return %c0_i32, %c0_i32_0 : i32, i32
  }
  func.func @transform_5(%arg0: i32, %arg1: memref<8x2xi32, #tpu.memory_space<smem>>, %arg2: memref<8xi32, #tpu.memory_space<smem>>) -> (i32, i32) {
    %c0_i32 = arith.constant 0 : i32
    %c0_i32_0 = arith.constant 0 : i32
    %c0_i32_1 = arith.constant 0 : i32
    return %c0_i32, %c0_i32_0 : i32, i32
  }
  func.func @transform_6(%arg0: i32, %arg1: memref<8x2xi32, #tpu.memory_space<smem>>, %arg2: memref<8xi32, #tpu.memory_space<smem>>) -> (i32, i32) {
    %c0_i32 = arith.constant 0 : i32
    %c0_i32_0 = arith.constant 0 : i32
    %c0_i32_1 = arith.constant 0 : i32
    return %c0_i32, %c0_i32_0 : i32, i32
  }
  func.func @transform_7(%arg0: i32, %arg1: memref<8x2xi32, #tpu.memory_space<smem>>, %arg2: memref<8xi32, #tpu.memory_space<smem>>) -> (i32, i32, i32) {
    %c0_i32 = arith.constant 0 : i32
    %c0_i32_0 = arith.constant 0 : i32
    %c0_i32_1 = arith.constant 0 : i32
    return %arg0, %c0_i32, %c0_i32_0 : i32, i32, i32
  }
}

module attributes {stable_mosaic.version = 11 : i64} {
  func.func @_encoder_kernel(%arg0: i32, %arg1: memref<1x2x32xf32, #tpu.memory_space<vmem>>, %arg2: memref<64x128xf32, #tpu.memory_space<vmem>>, %arg3: memref<1x128xf32, #tpu.memory_space<vmem>>, %arg4: memref<2x32xf32, #tpu.memory_space<vmem>>, %arg5: memref<2x32xf32, #tpu.memory_space<vmem>>) attributes {dimension_semantics = [#tpu.dimension_semantics<arbitrary>], iteration_bounds = array<i64: 8>, scalar_prefetch = 0 : i64, scratch_operands = 0 : i64, tpu.core_type = #tpu.core_type<tc>, window_params = [{transform_indices = @transform_0, window_bounds = array<i64: 1, 2, 32>}, {pipeline_mode = #tpu.pipeline_mode<synchronous>, transform_indices = @transform_1, window_bounds = array<i64: 64, 128>}, {pipeline_mode = #tpu.pipeline_mode<synchronous>, transform_indices = @transform_2, window_bounds = array<i64: 1, 128>}, {pipeline_mode = #tpu.pipeline_mode<synchronous>, transform_indices = @transform_3, window_bounds = array<i64: 2, 32>}, {pipeline_mode = #tpu.pipeline_mode<synchronous>, transform_indices = @transform_4, window_bounds = array<i64: 2, 32>}]} {
    %c0_i32 = arith.constant 0 : i32
    %0 = arith.cmpi eq, %arg0, %c0_i32 : i32
    %1 = arith.extui %0 : i1 to i32
    %c0_i32_0 = arith.constant 0 : i32
    %2 = arith.cmpi ne, %1, %c0_i32_0 : i32
    scf.if %2 {
      %cst_18 = arith.constant 0.000000e+00 : f32
      %40 = vector.broadcast %cst_18 : f32 to vector<2x32xf32>
      %c0_19 = arith.constant 0 : index
      %c0_20 = arith.constant 0 : index
      %41 = vector.load %arg4[%c0_19, %c0_20] : memref<2x32xf32, #tpu.memory_space<vmem>>, vector<2x32xf32>
      tpu.vector_store %arg4[%c0_19, %c0_20], %40 {strides = array<i32>} : memref<2x32xf32, #tpu.memory_space<vmem>>, vector<2x32xf32>,
      %cst_21 = arith.constant 0.000000e+00 : f32
      %42 = vector.broadcast %cst_21 : f32 to vector<2x32xf32>
      %c0_22 = arith.constant 0 : index
      %c0_23 = arith.constant 0 : index
      %43 = vector.load %arg5[%c0_22, %c0_23] : memref<2x32xf32, #tpu.memory_space<vmem>>, vector<2x32xf32>
      tpu.vector_store %arg5[%c0_22, %c0_23], %42 {strides = array<i32>} : memref<2x32xf32, #tpu.memory_space<vmem>>, vector<2x32xf32>,
    } else {
    }
    %c0 = arith.constant 0 : index
    %c0_1 = arith.constant 0 : index
    %c0_2 = arith.constant 0 : index
    %3 = vector.load %arg1[%c0, %c0_1, %c0_2] : memref<1x2x32xf32, #tpu.memory_space<vmem>>, vector<1x2x32xf32>
    %4 = vector.shape_cast %3 : vector<1x2x32xf32> to vector<2x32xf32>
    %c0_3 = arith.constant 0 : index
    %c0_4 = arith.constant 0 : index
    %5 = vector.load %arg4[%c0_3, %c0_4] : memref<2x32xf32, #tpu.memory_space<vmem>>, vector<2x32xf32>
    %c0_5 = arith.constant 0 : index
    %c0_6 = arith.constant 0 : index
    %6 = vector.load %arg5[%c0_5, %c0_6] : memref<2x32xf32, #tpu.memory_space<vmem>>, vector<2x32xf32>
    %7 = tpu.concatenate %4, %5 in 1 : vector<2x32xf32>, vector<2x32xf32> -> vector<2x64xf32>
    %c0_7 = arith.constant 0 : index
    %c0_8 = arith.constant 0 : index
    %8 = vector.load %arg2[%c0_7, %c0_8] : memref<64x128xf32, #tpu.memory_space<vmem>>, vector<64x128xf32>
    %cst = arith.constant dense<0.000000e+00> : vector<2x128xf32>
    %9 = tpu.matmul %7, %8, %cst {dimension_numbers = #tpu.dot_dimension_numbers<[1], [0], [0], [1], [0, 0, 1, 1], [], []>} : vector<2x64xf32>, vector<64x128xf32>, vector<2x128xf32> -> vector<2x128xf32>
    %c0_9 = arith.constant 0 : index
    %c0_10 = arith.constant 0 : index
    %10 = vector.load %arg3[%c0_9, %c0_10] : memref<1x128xf32, #tpu.memory_space<vmem>>, vector<1x128xf32>
    %11 = vector.broadcast %10 : vector<1x128xf32> to vector<2x128xf32>
    %12 = arith.addf %9, %11 : vector<2x128xf32>
    %13 = vector.extract_strided_slice %12 {offsets = [0, 0], sizes = [2, 32], strides = [1, 1]} : vector<2x128xf32> to vector<2x32xf32>
    %14 = arith.negf %13 : vector<2x32xf32>
    %15 = math.exp %14 : vector<2x32xf32>
    %cst_11 = arith.constant 1.000000e+00 : f32
    %16 = vector.broadcast %cst_11 : f32 to vector<2x32xf32>
    %17 = arith.addf %16, %15 : vector<2x32xf32>
    %18 = arith.divf %16, %17 : vector<2x32xf32>
    %19 = vector.extract_strided_slice %12 {offsets = [0, 32], sizes = [2, 32], strides = [1, 1]} : vector<2x128xf32> to vector<2x32xf32>
    %20 = arith.negf %19 : vector<2x32xf32>
    %21 = math.exp %20 : vector<2x32xf32>
    %cst_12 = arith.constant 1.000000e+00 : f32
    %22 = vector.broadcast %cst_12 : f32 to vector<2x32xf32>
    %23 = arith.addf %22, %21 : vector<2x32xf32>
    %24 = arith.divf %22, %23 : vector<2x32xf32>
    %25 = vector.extract_strided_slice %12 {offsets = [0, 64], sizes = [2, 32], strides = [1, 1]} : vector<2x128xf32> to vector<2x32xf32>
    %26 = math.tanh %25 : vector<2x32xf32>
    %27 = vector.extract_strided_slice %12 {offsets = [0, 96], sizes = [2, 32], strides = [1, 1]} : vector<2x128xf32> to vector<2x32xf32>
    %28 = arith.negf %27 : vector<2x32xf32>
    %29 = math.exp %28 : vector<2x32xf32>
    %cst_13 = arith.constant 1.000000e+00 : f32
    %30 = vector.broadcast %cst_13 : f32 to vector<2x32xf32>
    %31 = arith.addf %30, %29 : vector<2x32xf32>
    %32 = arith.divf %30, %31 : vector<2x32xf32>
    %33 = arith.mulf %24, %6 : vector<2x32xf32>
    %34 = arith.mulf %18, %26 : vector<2x32xf32>
    %35 = arith.addf %33, %34 : vector<2x32xf32>
    %36 = math.tanh %35 : vector<2x32xf32>
    %37 = arith.mulf %32, %36 : vector<2x32xf32>
    %c0_14 = arith.constant 0 : index
    %c0_15 = arith.constant 0 : index
    %38 = vector.load %arg5[%c0_14, %c0_15] : memref<2x32xf32, #tpu.memory_space<vmem>>, vector<2x32xf32>
    tpu.vector_store %arg5[%c0_14, %c0_15], %35 {strides = array<i32>} : memref<2x32xf32, #tpu.memory_space<vmem>>, vector<2x32xf32>,
    %c0_16 = arith.constant 0 : index
    %c0_17 = arith.constant 0 : index
    %39 = vector.load %arg4[%c0_16, %c0_17] : memref<2x32xf32, #tpu.memory_space<vmem>>, vector<2x32xf32>
    tpu.vector_store %arg4[%c0_16, %c0_17], %37 {strides = array<i32>} : memref<2x32xf32, #tpu.memory_space<vmem>>, vector<2x32xf32>,
    return
  }
  func.func @transform_0(%arg0: i32) -> (i32, i32, i32) {
    %c0_i32 = arith.constant 0 : i32
    %c0_i32_0 = arith.constant 0 : i32
    %c0_i32_1 = arith.constant 0 : i32
    return %arg0, %c0_i32, %c0_i32_0 : i32, i32, i32
  }
  func.func @transform_1(%arg0: i32) -> (i32, i32) {
    %c0_i32 = arith.constant 0 : i32
    %c0_i32_0 = arith.constant 0 : i32
    %c0_i32_1 = arith.constant 0 : i32
    return %c0_i32, %c0_i32_0 : i32, i32
  }
  func.func @transform_2(%arg0: i32) -> (i32, i32) {
    %c0_i32 = arith.constant 0 : i32
    %c0_i32_0 = arith.constant 0 : i32
    %c0_i32_1 = arith.constant 0 : i32
    return %c0_i32, %c0_i32_0 : i32, i32
  }
  func.func @transform_3(%arg0: i32) -> (i32, i32) {
    %c0_i32 = arith.constant 0 : i32
    %c0_i32_0 = arith.constant 0 : i32
    %c0_i32_1 = arith.constant 0 : i32
    return %c0_i32, %c0_i32_0 : i32, i32
  }
  func.func @transform_4(%arg0: i32) -> (i32, i32) {
    %c0_i32 = arith.constant 0 : i32
    %c0_i32_0 = arith.constant 0 : i32
    %c0_i32_1 = arith.constant 0 : i32
    return %c0_i32, %c0_i32_0 : i32, i32
  }
}

</mosaic_0001>

<llo_original>
// kernel: seq2seq_forward.3
$region0: #{seq2seq_forward.3}
  #allocation0 [shape = 'u32[]', space=smem, size = 0x4, offset = 0x4, fixed_abs, tag = 'smem constant byte address 0x4 - core index']
  #allocation1 [shape = 'u32[144,128]{1,0:T(1,128)}', space=vmem, size = 0x12000, scoped, tag = 'internal scratch']
  #allocation2 [shape = 'f32[2,32]{1,0:T(2,128)}', space=vmem, size = 0x400, scoped, tag = 'scratch operand']
  #allocation3 [shape = 'f32[2,32]{1,0:T(2,128)}', space=vmem, size = 0x400, scoped, tag = 'scratch operand']
  #allocation4 [shape = 'f32[2,128]{1,0:T(2,128)}', space=vmem, size = 0x400, scoped, tag = 'scratch operand']
  #allocation5 [shape = 's32[1]{0}', space=sflag, size = 0x4, scoped, tag = 'scoped memory for seq2seq_forward.3']
  #allocation6 [shape = 'u8[4096]{0}', space=smem, size = 0x1000, scoped, tag = 'prefetched SMEM operand 0']
  #allocation7 [shape = 'u8[512]{0}', space=smem, size = 0x200, scoped, tag = 'prefetched SMEM operand 1']
  %s0 = inlined_call_operand.vmem [shape: s32[8,2], index: 0, kind: input, shape index: {}]
  %s1 = inlined_call_operand.vmem [shape: s32[8], index: 1, kind: input, shape index: {}]
  %s2 = inlined_call_operand.vmem [shape: f32[2,32], index: 2, kind: input, shape index: {}]
  %s3 = inlined_call_operand.vmem [shape: f32[2,32], index: 3, kind: input, shape index: {}]
  %s4 = inlined_call_operand.vmem [shape: f32[128,32], index: 4, kind: input, shape index: {}]
  %s5 = inlined_call_operand.vmem [shape: f32[64,128], index: 5, kind: input, shape index: {}]
  %s6 = inlined_call_operand.vmem [shape: f32[1,128], index: 6, kind: input, shape index: {}]
  %s7 = inlined_call_operand.vmem [shape: f32[32,128], index: 7, kind: input, shape index: {}]
  %s8 = inlined_call_operand.vmem [shape: f32[1,128], index: 8, kind: input, shape index: {}]
  %s9 = inlined_call_operand.vmem [shape: f32[7,2,128], index: 9, kind: output, shape index: {}]
  %s10 = sld [smem:[#allocation0]]
  $region65: #{seq2seq_forward.3} parent=0
    _
  %s12 = ssub.s32 1, %s10
  %s13 = scalar_select 0, %s12, %s10
  %s14 = sshll.u32 %s0, 4
  %s15 = int_to_ptr.vmem [resolvable:$true] %s14
  %17 = dma.vmem_to_smem %s15, 128, [#allocation6], [#allocation5]
  %s18 = sshll.u32 %s1, 4
  %s19 = int_to_ptr.vmem [resolvable:$true] %s18
  %21 = dma.vmem_to_smem %s19, 16, [#allocation7], [#allocation5]
  %22 = dma.done [#allocation5], 144
  %23 = sfence
  loop: start=0, step=1, limit=9
  $region2: #{seq2seq_forward.3} parent=0 // loop_pre_header
    _
  $region3: #{seq2seq_forward.3} parent=0 // loop_header
    %s25 = sphi 0, %s29
    %p26 = scmp.ge.s32.totalorder %s25, 9
    %s33 = sphi 0, %s33
    %s35 = sphi 0, %s33
    %s36 = sphi 0, %s35
    %s50 = sphi 0, %s36
    %s54 = sphi 0, %s54
    %s56 = sphi 0, %s54
    %s57 = sphi 0, %s56
    %s71 = sphi 0, %s57
    %s75 = sphi 0, %s75
    %s77 = sphi 0, %s75
    %s78 = sphi 0, %s77
    %s92 = sphi 0, %s78
    %s96 = sphi 0, %s96
    %s98 = sphi 0, %s96
    %s99 = sphi 0, %s98
    %s113 = sphi 0, %s99
    %s117 = sphi 0, %s117
    %s119 = sphi 0, %s117
    %s120 = sphi 0, %s119
    %s134 = sphi 0, %s120
    %s138 = sphi 0, %s138
    %s140 = sphi 0, %s138
    %s141 = sphi 0, %s140
    %s155 = sphi 0, %s141
    %s159 = sphi 0, %s159
    %s161 = sphi 0, %s159
    %s162 = sphi 0, %s161
    %s176 = sphi 0, %s162
    %s182 = sphi 0, %s184
    %s185 = sphi 0, %s182
    %s186 = sphi 0, %s185
    %s202 = sphi 0, %s186
  $region4: #{seq2seq_forward.3} parent=0 // loop_header_branch
    %28 = sbr.rel (%p26) target = $region8
  $region5: #{seq2seq_forward.3} parent=0 // loop_body
    %s30 = ssub.s32 %s25, 1
    %s31 = ssub.s32 %s25, 2
    %s32 = sadd.s32 %s25, 1
    %s34 = sadd.s32 %s33, 1
    %p37 = scmp.eq.s32.totalorder %s25, 6
    %p38 = scmp.ne.s32.totalorder %s33, %s35
    %p39 = scmp.eq.s32.totalorder %s25, 0
    %p40 = por %p38, %p39
    %p41 = scmp.ne.s32.totalorder %s33, %s35
    %p42 = scmp.eq.s32.totalorder %s30, 6
    %p43 = por %p41, %p42
    %p44 = scmp.ne.s32.totalorder %s35, %s36
    %p45 = scmp.eq.s32.totalorder %s30, 0
    %p46 = por %p44, %p45
    %p47 = scmp.ne.s32.totalorder %s35, %s36
    %p48 = scmp.eq.s32.totalorder %s31, 6
    %p49 = por %p47, %p48
    %p51 = scmp.ne.s32.totalorder %s36, %s50
    %p52 = scmp.eq.s32.totalorder %s31, 0
    %p53 = por %p51, %p52
    %s55 = sadd.s32 %s54, 1
    %p58 = scmp.eq.s32.totalorder %s25, 6
    %p59 = scmp.ne.s32.totalorder %s54, %s56
    %p60 = scmp.eq.s32.totalorder %s25, 0
    %p61 = por %p59, %p60
    %p62 = scmp.ne.s32.totalorder %s54, %s56
    %p63 = scmp.eq.s32.totalorder %s30, 6
    %p64 = por %p62, %p63
    %p65 = scmp.ne.s32.totalorder %s56, %s57
    %p66 = scmp.eq.s32.totalorder %s30, 0
    %p67 = por %p65, %p66
    %p68 = scmp.ne.s32.totalorder %s56, %s57
    %p69 = scmp.eq.s32.totalorder %s31, 6
    %p70 = por %p68, %p69
    %p72 = scmp.ne.s32.totalorder %s57, %s71
    %p73 = scmp.eq.s32.totalorder %s31, 0
    %p74 = por %p72, %p73
    %s76 = sadd.s32 %s75, 1
    %p79 = scmp.eq.s32.totalorder %s25, 6
    %p80 = scmp.ne.s32.totalorder %s75, %s77
    %p81 = scmp.eq.s32.totalorder %s25, 0
    %p82 = por %p80, %p81
    %p83 = scmp.ne.s32.totalorder %s75, %s77
    %p84 = scmp.eq.s32.totalorder %s30, 6
    %p85 = por %p83, %p84
    %p86 = scmp.ne.s32.totalorder %s77, %s78
    %p87 = scmp.eq.s32.totalorder %s30, 0
    %p88 = por %p86, %p87
    %p89 = scmp.ne.s32.totalorder %s77, %s78
    %p90 = scmp.eq.s32.totalorder %s31, 6
    %p91 = por %p89, %p90
    %p93 = scmp.ne.s32.totalorder %s78, %s92
    %p94 = scmp.eq.s32.totalorder %s31, 0
    %p95 = por %p93, %p94
    %s97 = sadd.s32 %s96, 1
    %p100 = scmp.eq.s32.totalorder %s25, 6
    %p101 = scmp.ne.s32.totalorder %s96, %s98
    %p102 = scmp.eq.s32.totalorder %s25, 0
    %p103 = por %p101, %p102
    %p104 = scmp.ne.s32.totalorder %s96, %s98
    %p105 = scmp.eq.s32.totalorder %s30, 6
    %p106 = por %p104, %p105
    %p107 = scmp.ne.s32.totalorder %s98, %s99
    %p108 = scmp.eq.s32.totalorder %s30, 0
    %p109 = por %p107, %p108
    %p110 = scmp.ne.s32.totalorder %s98, %s99
    %p111 = scmp.eq.s32.totalorder %s31, 6
    %p112 = por %p110, %p111
    %p114 = scmp.ne.s32.totalorder %s99, %s113
    %p115 = scmp.eq.s32.totalorder %s31, 0
    %p116 = por %p114, %p115
    %s118 = sadd.s32 %s117, 1
    %p121 = scmp.eq.s32.totalorder %s25, 6
    %p122 = scmp.ne.s32.totalorder %s117, %s119
    %p123 = scmp.eq.s32.totalorder %s25, 0
    %p124 = por %p122, %p123
    %p125 = scmp.ne.s32.totalorder %s117, %s119
    %p126 = scmp.eq.s32.totalorder %s30, 6
    %p127 = por %p125, %p126
    %p128 = scmp.ne.s32.totalorder %s119, %s120
    %p129 = scmp.eq.s32.totalorder %s30, 0
    %p130 = por %p128, %p129
    %p131 = scmp.ne.s32.totalorder %s119, %s120
    %p132 = scmp.eq.s32.totalorder %s31, 6
    %p133 = por %p131, %p132
    %p135 = scmp.ne.s32.totalorder %s120, %s134
    %p136 = scmp.eq.s32.totalorder %s31, 0
    %p137 = por %p135, %p136
    %s139 = sadd.s32 %s138, 1
    %p142 = scmp.eq.s32.totalorder %s25, 6
    %p143 = scmp.ne.s32.totalorder %s138, %s140
    %p144 = scmp.eq.s32.totalorder %s25, 0
    %p145 = por %p143, %p144
    %p146 = scmp.ne.s32.totalorder %s138, %s140
    %p147 = scmp.eq.s32.totalorder %s30, 6
    %p148 = por %p146, %p147
    %p149 = scmp.ne.s32.totalorder %s140, %s141
    %p150 = scmp.eq.s32.totalorder %s30, 0
    %p151 = por %p149, %p150
    %p152 = scmp.ne.s32.totalorder %s140, %s141
    %p153 = scmp.eq.s32.totalorder %s31, 6
    %p154 = por %p152, %p153
    %p156 = scmp.ne.s32.totalorder %s141, %s155
    %p157 = scmp.eq.s32.totalorder %s31, 0
    %p158 = por %p156, %p157
    %s160 = sadd.s32 %s159, 1
    %p163 = scmp.eq.s32.totalorder %s25, 6
    %p164 = scmp.ne.s32.totalorder %s159, %s161
    %p165 = scmp.eq.s32.totalorder %s25, 0
    %p166 = por %p164, %p165
    %p167 = scmp.ne.s32.totalorder %s159, %s161
    %p168 = scmp.eq.s32.totalorder %s30, 6
    %p169 = por %p167, %p168
    %p170 = scmp.ne.s32.totalorder %s161, %s162
    %p171 = scmp.eq.s32.totalorder %s30, 0
    %p172 = por %p170, %p171
    %p173 = scmp.ne.s32.totalorder %s161, %s162
    %p174 = scmp.eq.s32.totalorder %s31, 6
    %p175 = por %p173, %p174
    %p177 = scmp.ne.s32.totalorder %s162, %s176
    %p178 = scmp.eq.s32.totalorder %s31, 0
    %p179 = por %p177, %p178
    %s180 = ssub.s32 %s25, %s32
    %p181 = scmp.eq.s32.totalorder %s180, 0
    %s183 = sadd.s32 %s182, 1
    %s184 = scalar_select %p181, %s182, %s183
    %p187 = pneg %p181
    %p188 = scmp.eq.s32.totalorder %s25, 6
    %p189 = por %p187, %p188
    %p190 = scmp.ne.s32.totalorder %s182, %s185
    %p191 = scmp.eq.s32.totalorder %s25, 0
    %p192 = por %p190, %p191
    %p193 = scmp.ne.s32.totalorder %s182, %s185
    %p194 = scmp.eq.s32.totalorder %s30, 6
    %p195 = por %p193, %p194
    %p196 = scmp.ne.s32.totalorder %s185, %s186
    %p197 = scmp.eq.s32.totalorder %s30, 0
    %p198 = por %p196, %p197
    %p199 = scmp.ne.s32.totalorder %s185, %s186
    %p200 = scmp.eq.s32.totalorder %s31, 6
    %p201 = por %p199, %p200
    %p203 = scmp.ne.s32.totalorder %s186, %s202
    %p204 = scmp.eq.s32.totalorder %s31, 0
    %p205 = por %p203, %p204
    %p206 = scmp.le.s32.totalorder 1, %s25
    %p207 = scmp.lt.s32.totalorder %s25, 8
    %p208 = pnand %p206, %p207
    %p209 = pneg %p208
    // Predicated region
    $region9: #{seq2seq_forward.3} parent=5 // pred_check
      _
    $region10: #{seq2seq_forward.3} parent=5 // pred_check_branch
      %211 = sbr.rel (%p208) target = $region12
    $region11: #{seq2seq_forward.3} parent=5 // pred_region
      %s212 = ssub.s32 %s25, 1
      // Predicated region
      $region13: #{seq2seq_forward.3} parent=11 // pred_check
        %p213 = pneg %p46
      $region14: #{seq2seq_forward.3} parent=11 // pred_check_branch
        %215 = sbr.rel (%p213) target = $region16
      $region15: #{seq2seq_forward.3} parent=11 // pred_region
        _
      $region16: #{seq2seq_forward.3} parent=11 // pred_fallthru
        _
      // Predicated region
      $region17: #{seq2seq_forward.3} parent=11 // pred_check
        %p216 = pneg %p67
      $region18: #{seq2seq_forward.3} parent=11 // pred_check_branch
        %218 = sbr.rel (%p216) target = $region20
      $region19: #{seq2seq_forward.3} parent=11 // pred_region
        _
      $region20: #{seq2seq_forward.3} parent=11 // pred_fallthru
        _
      // Predicated region
      $region21: #{seq2seq_forward.3} parent=11 // pred_check
        %p219 = pneg %p88
      $region22: #{seq2seq_forward.3} parent=11 // pred_check_branch
        %221 = sbr.rel (%p219) target = $region24
      $region23: #{seq2seq_forward.3} parent=11 // pred_region
        _
      $region24: #{seq2seq_forward.3} parent=11 // pred_fallthru
        _
      // Predicated region
      $region25: #{seq2seq_forward.3} parent=11 // pred_check
        %p222 = pneg %p109
      $region26: #{seq2seq_forward.3} parent=11 // pred_check_branch
        %224 = sbr.rel (%p222) target = $region28
      $region27: #{seq2seq_forward.3} parent=11 // pred_region
        _
      $region28: #{seq2seq_forward.3} parent=11 // pred_fallthru
        _
      // Predicated region
      $region29: #{seq2seq_forward.3} parent=11 // pred_check
        %p225 = pneg %p130
      $region30: #{seq2seq_forward.3} parent=11 // pred_check_branch
        %227 = sbr.rel (%p225) target = $region32
      $region31: #{seq2seq_forward.3} parent=11 // pred_region
        _
      $region32: #{seq2seq_forward.3} parent=11 // pred_fallthru
        _
      // Predicated region
      $region33: #{seq2seq_forward.3} parent=11 // pred_check
        %p228 = pneg %p151
      $region34: #{seq2seq_forward.3} parent=11 // pred_check_branch
        %230 = sbr.rel (%p228) target = $region36
      $region35: #{seq2seq_forward.3} parent=11 // pred_region
        _
      $region36: #{seq2seq_forward.3} parent=11 // pred_fallthru
        _
      // Predicated region
      $region37: #{seq2seq_forward.3} parent=11 // pred_check
        %p231 = pneg %p172
      $region38: #{seq2seq_forward.3} parent=11 // pred_check_branch
        %233 = sbr.rel (%p231) target = $region40
      $region39: #{seq2seq_forward.3} parent=11 // pred_region
        _
      $region40: #{seq2seq_forward.3} parent=11 // pred_fallthru
        _
    $region12: #{seq2seq_forward.3} parent=5 // pred_fallthru
      _
    %p234 = scmp.lt.s32.totalorder %s25, 7
    // Predicated region
    $region41: #{seq2seq_forward.3} parent=5 // pred_check
      %p235 = pneg %p234
    $region42: #{seq2seq_forward.3} parent=5 // pred_check_branch
      %237 = sbr.rel (%p235) target = $region44
    $region43: #{seq2seq_forward.3} parent=5 // pred_region
      _
    $region44: #{seq2seq_forward.3} parent=5 // pred_fallthru
      _
    %p238 = scmp.le.s32.totalorder 1, %s25
    %p239 = scmp.lt.s32.totalorder %s25, 8
    %p240 = pnand %p238, %p239
    %p241 = pneg %p240
    // Predicated region
    $region45: #{seq2seq_forward.3} parent=5 // pred_check
      _
    $region46: #{seq2seq_forward.3} parent=5 // pred_check_branch
      %243 = sbr.rel (%p240) target = $region48
    $region47: #{seq2seq_forward.3} parent=5 // pred_region
      %s244 = ssub.s32 %s25, 1
      %p245 = pneg %p46
      %p246 = pneg %p43
      %p247 = pneg %p67
      %p248 = pneg %p64
      %p249 = pneg %p88
      %p250 = pneg %p85
      %p251 = pneg %p109
      %p252 = pneg %p106
      %p253 = pneg %p130
      %p254 = pneg %p127
      %p255 = pneg %p151
      %p256 = pneg %p148
      %p257 = pneg %p172
      %p258 = pneg %p169
      %p259 = pneg %p198
      %p260 = pneg %p195
      %p261 = scmp.lt.s32.totalorder %s30, 6
      %s262 = scalar_select %p261, %s30, 6
      %s263 = smul.addr %s262, 2
      %s264 = scalar_lea.vmem %s9, %s263
      %p265 = scmp.lt.s32.totalorder %s30, 6
      %s266 = scalar_select %p265, %s30, 6
      %s267 = smul.addr %s266, 2
      %s268 = scalar_lea.vmem %s9, %s267
      %v269 = vlaneseq
      %v270 = vand.u32 %v269, 127
      %p271 = scmp.eq.s32.totalorder %s30, 0
      // Predicated region
      $region49: #{seq2seq_forward.3} parent=47 // pred_check
        %p272 = pneg %p271
      $region50: #{seq2seq_forward.3} parent=47 // pred_check_branch
        %274 = sbr.rel (%p272) target = $region52
      $region51: #{seq2seq_forward.3} parent=47 // pred_region
        %v275 = vld [vmem:[%s2] sm:$0x3]
        %vm276 = vcmask 254976
        %277 = vst.msk [vmem:[#allocation2] sm:$0x3] %vm276, %v275
        %v278 = vld [vmem:[%s3] sm:$0x3]
        %279 = vst.msk [vmem:[#allocation3] sm:$0x3] %vm276, %v278
        %s280 = sld [smem:[#allocation6]]
        %v281 = vstv %s280
        %vm282 = vcmp.eq.s32.totalorder %v270, %v281
        %v283 = vsel %vm282, 1, 0
        %v284 = vcvt.s32.f32 %v283
        %s285 = sld [smem:[#allocation6 + $0x1]]
        %v286 = vstv %s285
        %vm287 = vcmp.eq.s32.totalorder %v270, %v286
        %v288 = vsel %vm287, 1, 0
        %v289 = vcvt.s32.f32 %v288
        %vm290 = vcmask 1040384
        %v291 = vsel %vm290, %v284, %v289
        %292 = vst [vmem:[#allocation4] sm:$0x3] %v291
      $region52: #{seq2seq_forward.3} parent=47 // pred_fallthru
        _
      %v293 = vld [vmem:[#allocation4] sm:$0x3]
      %v294 = vld [vmem:[%s4] sm:$0xff]
      %v295 = vld [vmem:[%s4 + $0x8] sm:$0xff]
      %v296 = vld [vmem:[%s4 + $0x10] sm:$0xff]
      %v297 = vld [vmem:[%s4 + $0x18] sm:$0xff]
      %v298 = vld [vmem:[%s4 + $0x20] sm:$0xff]
      %v299 = vld [vmem:[%s4 + $0x28] sm:$0xff]
      %v300 = vld [vmem:[%s4 + $0x30] sm:$0xff]
      %v301 = vld [vmem:[%s4 + $0x38] sm:$0xff]
      %v302 = vld [vmem:[%s4 + $0x40] sm:$0xff]
      %v303 = vld [vmem:[%s4 + $0x48] sm:$0xff]
      %v304 = vld [vmem:[%s4 + $0x50] sm:$0xff]
      %v305 = vld [vmem:[%s4 + $0x58] sm:$0xff]
      %v306 = vld [vmem:[%s4 + $0x60] sm:$0xff]
      %v307 = vld [vmem:[%s4 + $0x68] sm:$0xff]
      %v308 = vld [vmem:[%s4 + $0x70] sm:$0xff]
      %v309 = vld [vmem:[%s4 + $0x78] sm:$0xff]
      %310 = vmatprep.subr.mxu0 0.0
      %311 = vmatpush1.msra.mxu0 %v309
      %312 = vmatprep.subr.mxu0 0.0
      %313 = vmatpush1.msra.mxu0 %v308
      %314 = vmatprep.subr.mxu0 0.0
      %315 = vmatpush1.msra.mxu0 %v307
      %316 = vmatprep.subr.mxu0 0.0
      %317 = vmatpush1.msra.mxu0 %v306
      %318 = vmatprep.subr.mxu0 0.0
      %319 = vmatpush1.msra.mxu0 %v305
      %320 = vmatprep.subr.mxu0 0.0
      %321 = vmatpush1.msra.mxu0 %v304
      %322 = vmatprep.subr.mxu0 0.0
      %323 = vmatpush1.msra.mxu0 %v303
      %324 = vmatprep.subr.mxu0 0.0
      %325 = vmatpush1.msra.mxu0 %v302
      %326 = vmatprep.subr.mxu0 0.0
      %327 = vmatpush1.msra.mxu0 %v301
      %328 = vmatprep.subr.mxu0 0.0
      %329 = vmatpush1.msra.mxu0 %v300
      %330 = vmatprep.subr.mxu0 0.0
      %331 = vmatpush1.msra.mxu0 %v299
      %332 = vmatprep.subr.mxu0 0.0
      %333 = vmatpush1.msra.mxu0 %v298
      %334 = vmatprep.subr.mxu0 0.0
      %335 = vmatpush1.msra.mxu0 %v297
      %336 = vmatprep.subr.mxu0 0.0
      %337 = vmatpush1.msra.mxu0 %v296
      %338 = vmatprep.subr.mxu0 0.0
      %339 = vmatpush1.msra.mxu0 %v295
      %340 = vmatprep.subr.mxu0 0.0
      %341 = vmatpush1.msra.mxu0 %v294
      %342 = vmatprep.subr.mxu0 0.0
      %343 = vmatpush2.msra.mxu0 0.0
      %344 = vmatprep.subr.mxu0 0.0
      %345 = vmatpush2.msra.mxu0 0.0
      %346 = vmatprep.subr.mxu0 0.0
      %347 = vmatpush2.msra.mxu0 0.0
      %348 = vmatprep.subr.mxu0 0.0
      %349 = vmatpush2.msra.mxu0 0.0
      %350 = vmatprep.subr.mxu0 0.0
      %351 = vmatpush2.msra.mxu0 0.0
      %352 = vmatprep.subr.mxu0 0.0
      %353 = vmatpush2.msra.mxu0 0.0
      %354 = vmatprep.subr.mxu0 0.0
      %355 = vmatpush2.msra.mxu0 0.0
      %356 = vmatprep.subr.mxu0 0.0
      %357 = vmatpush2.msra.mxu0 0.0
      %358 = vmatprep.subr.mxu0 0.0
      %359 = vmatpush2.msra.mxu0 0.0
      %360 = vmatprep.subr.mxu0 0.0
      %361 = vmatpush2.msra.mxu0 0.0
      %362 = vmatprep.subr.mxu0 0.0
      %363 = vmatpush2.msra.mxu0 0.0
      %364 = vmatprep.subr.mxu0 0.0
      %365 = vmatpush2.msra.mxu0 0.0
      %366 = vmatprep.subr.mxu0 0.0
      %367 = vmatpush2.msra.mxu0 0.0
      %368 = vmatprep.subr.mxu0 0.0
      %369 = vmatpush2.msra.mxu0 0.0
      %370 = vmatprep.subr.mxu0 0.0
      %371 = vmatpush2.msra.mxu0 0.0
      %372 = vmatprep.subr.mxu0 0.0
      %373 = vmatpush2.msra.mxu0 0.0
      %374 = vmatprep.mubr.f32.mxu0 0.0
      %375 = vmatmul.mubr.f32.gmra.mxu0 %v293
      %v376 = vpop.f32.mrf.mxu0
      %v377 = vadd.f32 0.0, %v376
      %v378 = vpop.f32.mrf.mxu0
      %379 = vdwg.mxu0
      %v380 = vld [vmem:[#allocation2] sm:$0x3]
      %v381 = vld [vmem:[#allocation3] sm:$0x3]
      %383 = vrot.lane.b32.xlu0 %v380, 32
      %v384 = vpop.permute.xlu0 %383
      %vm386 = vcmask 261120
      %v387 = vsel %vm386, %v377, %v384
      %v388 = vld [vmem:[%s5] sm:$0xff]
      %v389 = vld [vmem:[%s5 + $0x8] sm:$0xff]
      %v390 = vld [vmem:[%s5 + $0x10] sm:$0xff]
      %v391 = vld [vmem:[%s5 + $0x18] sm:$0xff]
      %v392 = vld [vmem:[%s5 + $0x20] sm:$0xff]
      %v393 = vld [vmem:[%s5 + $0x28] sm:$0xff]
      %v394 = vld [vmem:[%s5 + $0x30] sm:$0xff]
      %v395 = vld [vmem:[%s5 + $0x38] sm:$0xff]
      %v396 = vld [vmem:[%s6] sm:$0x1]
      %v398 = vlaneseq
      %v399 = vshrl.u32 %v398, 7
      %v400 = vsub.s32 0, %v399
      %v401 = vrot.slane %v396, %v400
      %vm403 = vcmask 523264
      %v405 = vsel %vm403, %v387, 0
      %407 = vmatprep.subr.mxu0 0.0
      %408 = vmatpush1.msra.mxu0 0.0
      %409 = vmatprep.subr.mxu0 0.0
      %410 = vmatpush1.msra.mxu0 0.0
      %411 = vmatprep.subr.mxu0 0.0
      %412 = vmatpush1.msra.mxu0 0.0
      %413 = vmatprep.subr.mxu0 0.0
      %414 = vmatpush1.msra.mxu0 0.0
      %415 = vmatprep.subr.mxu0 0.0
      %416 = vmatpush1.msra.mxu0 0.0
      %417 = vmatprep.subr.mxu0 0.0
      %418 = vmatpush1.msra.mxu0 0.0
      %419 = vmatprep.subr.mxu0 0.0
      %420 = vmatpush1.msra.mxu0 0.0
      %421 = vmatprep.subr.mxu0 0.0
      %422 = vmatpush1.msra.mxu0 0.0
      %423 = vmatprep.subr.mxu0 0.0
      %424 = vmatpush1.msra.mxu0 %v395
      %425 = vmatprep.subr.mxu0 0.0
      %426 = vmatpush1.msra.mxu0 %v394
      %427 = vmatprep.subr.mxu0 0.0
      %428 = vmatpush1.msra.mxu0 %v393
      %429 = vmatprep.subr.mxu0 0.0
      %430 = vmatpush1.msra.mxu0 %v392
      %431 = vmatprep.subr.mxu0 0.0
      %432 = vmatpush1.msra.mxu0 %v391
      %433 = vmatprep.subr.mxu0 0.0
      %434 = vmatpush1.msra.mxu0 %v390
      %435 = vmatprep.subr.mxu0 0.0
      %436 = vmatpush1.msra.mxu0 %v389
      %437 = vmatprep.subr.mxu0 0.0
      %438 = vmatpush1.msra.mxu0 %v388
      %439 = vmatprep.subr.mxu0 0.0
      %440 = vmatpush2.msra.mxu0 0.0
      %441 = vmatprep.subr.mxu0 0.0
      %442 = vmatpush2.msra.mxu0 0.0
      %443 = vmatprep.subr.mxu0 0.0
      %444 = vmatpush2.msra.mxu0 0.0
      %445 = vmatprep.subr.mxu0 0.0
      %446 = vmatpush2.msra.mxu0 0.0
      %447 = vmatprep.subr.mxu0 0.0
      %448 = vmatpush2.msra.mxu0 0.0
      %449 = vmatprep.subr.mxu0 0.0
      %450 = vmatpush2.msra.mxu0 0.0
      %451 = vmatprep.subr.mxu0 0.0
      %452 = vmatpush2.msra.mxu0 0.0
      %453 = vmatprep.subr.mxu0 0.0
      %454 = vmatpush2.msra.mxu0 0.0
      %455 = vmatprep.subr.mxu0 0.0
      %456 = vmatpush2.msra.mxu0 0.0
      %457 = vmatprep.subr.mxu0 0.0
      %458 = vmatpush2.msra.mxu0 0.0
      %459 = vmatprep.subr.mxu0 0.0
      %460 = vmatpush2.msra.mxu0 0.0
      %461 = vmatprep.subr.mxu0 0.0
      %462 = vmatpush2.msra.mxu0 0.0
      %463 = vmatprep.subr.mxu0 0.0
      %464 = vmatpush2.msra.mxu0 0.0
      %465 = vmatprep.subr.mxu0 0.0
      %466 = vmatpush2.msra.mxu0 0.0
      %467 = vmatprep.subr.mxu0 0.0
      %468 = vmatpush2.msra.mxu0 0.0
      %469 = vmatprep.subr.mxu0 0.0
      %470 = vmatpush2.msra.mxu0 0.0
      %471 = vmatprep.mubr.f32.mxu0 0.0
      %472 = vmatmul.mubr.f32.gmra.mxu0 %v405
      %v473 = vpop.f32.mrf.mxu0
      %v474 = vadd.f32 %v401, %v473
      %v475 = vpop.f32.mrf.mxu0
      %476 = vdwg.mxu0
      %v477 = vxor.u32 %v474, 2147483648
      %v478 = vmul.f32 %v477, 1.442695
      %v479 = vpow.pop %v478
      %v480 = vadd.f32 %v479, 1.0
      %v481 = vrcp.pop %v480
      %v482 = vmul.f32 1.0, %v481
      %v483 = vtanh.pop %v474
      %485 = vrot.lane.b32.xlu0 %v381, 32
      %v486 = vpop.permute.xlu0 %485
      %v488 = vmul.f32 %v482, %v486
      %490 = vrot.lane.b32.xlu0 %v483, 64
      %v491 = vpop.permute.xlu0 %490
      %v493 = vmul.f32 %v482, %v491
      %495 = vrot.lane.b32.xlu0 %v493, 32
      %v496 = vpop.permute.xlu0 %495
      %v498 = vadd.f32 %v488, %v496
      %v499 = vtanh.pop %v498
      %501 = vrot.lane.b32.xlu0 %v499, 64
      %v502 = vpop.permute.xlu0 %501
      %v504 = vmul.f32 %v482, %v502
      %506 = vrot.lane.b32.xlu0 %v498, 96
      %v507 = vpop.permute.xlu0 %506
      %vm509 = vcmask 254976
      %510 = vst.msk [vmem:[#allocation3] sm:$0x3] %vm509, %v507
      %512 = vrot.lane.b32.xlu0 %v504, 32
      %v513 = vpop.permute.xlu0 %512
      %515 = vst.msk [vmem:[#allocation2] sm:$0x3] %vm509, %v513
      %v516 = vld [vmem:[%s7] sm:$0xff]
      %v517 = vld [vmem:[%s7 + $0x8] sm:$0xff]
      %v518 = vld [vmem:[%s7 + $0x10] sm:$0xff]
      %v519 = vld [vmem:[%s7 + $0x18] sm:$0xff]
      %v520 = vld [vmem:[%s8] sm:$0x1]
      %v522 = vlaneseq
      %v523 = vshrl.u32 %v522, 7
      %v524 = vsub.s32 0, %v523
      %v525 = vrot.slane %v520, %v524
      %v527 = vsel %vm386, %v513, 0
      %529 = vmatprep.subr.mxu0 0.0
      %530 = vmatpush1.msra.mxu0 0.0
      %531 = vmatprep.subr.mxu0 0.0
      %532 = vmatpush1.msra.mxu0 0.0
      %533 = vmatprep.subr.mxu0 0.0
      %534 = vmatpush1.msra.mxu0 0.0
      %535 = vmatprep.subr.mxu0 0.0
      %536 = vmatpush1.msra.mxu0 0.0
      %537 = vmatprep.subr.mxu0 0.0
      %538 = vmatpush1.msra.mxu0 0.0
      %539 = vmatprep.subr.mxu0 0.0
      %540 = vmatpush1.msra.mxu0 0.0
      %541 = vmatprep.subr.mxu0 0.0
      %542 = vmatpush1.msra.mxu0 0.0
      %543 = vmatprep.subr.mxu0 0.0
      %544 = vmatpush1.msra.mxu0 0.0
      %545 = vmatprep.subr.mxu0 0.0
      %546 = vmatpush1.msra.mxu0 0.0
      %547 = vmatprep.subr.mxu0 0.0
      %548 = vmatpush1.msra.mxu0 0.0
      %549 = vmatprep.subr.mxu0 0.0
      %550 = vmatpush1.msra.mxu0 0.0
      %551 = vmatprep.subr.mxu0 0.0
      %552 = vmatpush1.msra.mxu0 0.0
      %553 = vmatprep.subr.mxu0 0.0
      %554 = vmatpush1.msra.mxu0 %v519
      %555 = vmatprep.subr.mxu0 0.0
      %556 = vmatpush1.msra.mxu0 %v518
      %557 = vmatprep.subr.mxu0 0.0
      %558 = vmatpush1.msra.mxu0 %v517
      %559 = vmatprep.subr.mxu0 0.0
      %560 = vmatpush1.msra.mxu0 %v516
      %561 = vmatprep.subr.mxu0 0.0
      %562 = vmatpush2.msra.mxu0 0.0
      %563 = vmatprep.subr.mxu0 0.0
      %564 = vmatpush2.msra.mxu0 0.0
      %565 = vmatprep.subr.mxu0 0.0
      %566 = vmatpush2.msra.mxu0 0.0
      %567 = vmatprep.subr.mxu0 0.0
      %568 = vmatpush2.msra.mxu0 0.0
      %569 = vmatprep.subr.mxu0 0.0
      %570 = vmatpush2.msra.mxu0 0.0
      %571 = vmatprep.subr.mxu0 0.0
      %572 = vmatpush2.msra.mxu0 0.0
      %573 = vmatprep.subr.mxu0 0.0
      %574 = vmatpush2.msra.mxu0 0.0
      %575 = vmatprep.subr.mxu0 0.0
      %576 = vmatpush2.msra.mxu0 0.0
      %577 = vmatprep.subr.mxu0 0.0
      %578 = vmatpush2.msra.mxu0 0.0
      %579 = vmatprep.subr.mxu0 0.0
      %580 = vmatpush2.msra.mxu0 0.0
      %581 = vmatprep.subr.mxu0 0.0
      %582 = vmatpush2.msra.mxu0 0.0
      %583 = vmatprep.subr.mxu0 0.0
      %584 = vmatpush2.msra.mxu0 0.0
      %585 = vmatprep.subr.mxu0 0.0
      %586 = vmatpush2.msra.mxu0 0.0
      %587 = vmatprep.subr.mxu0 0.0
      %588 = vmatpush2.msra.mxu0 0.0
      %589 = vmatprep.subr.mxu0 0.0
      %590 = vmatpush2.msra.mxu0 0.0
      %591 = vmatprep.subr.mxu0 0.0
      %592 = vmatpush2.msra.mxu0 0.0
      %593 = vmatprep.mubr.f32.mxu0 0.0
      %594 = vmatmul.mubr.f32.gmra.mxu0 %v527
      %v595 = vpop.f32.mrf.mxu0
      %v596 = vadd.f32 %v525, %v595
      %v597 = vpop.f32.mrf.mxu0
      %598 = vdwg.mxu0
      %599 = vst [vmem:[%s268] sm:$0x3] %v596
      %vm600 = vcmask 1041408
      %v601 = vsel %vm600, %v596, -inf
      %602 = vmax.xlane.f32.xlu0 %v601
      %v603 = vpop.xlane.xlu0 %602
      %vm604 = vcmp.eq.f32.partialorder %v596, %v603
      %v605 = vsel %vm604, %v270, 128
      %v606 = vsel %vm600, %v605, 2147483647
      %v607 = vand.u32 %v606, 65535
      %v608 = vshra.s32 %v606, 16
      %v609 = vcvt.s32.f32 %v607
      %v610 = vcvt.s32.f32 %v608
      %611 = vmin.xlane.f32.xlu0 %v610
      %v612 = vpop.xlane.xlu0 %611
      %vm613 = vcmp.eq.f32.partialorder %v610, %v612
      %v614 = vsel %vm613, %v609, inf
      %615 = vmin.xlane.f32.xlu0 %v614
      %v616 = vpop.xlane.xlu0 %615
      %v617 = vcvt.f32.s32 %v616
      %v618 = vcvt.f32.s32 %v612
      %v619 = vshll.u32 %v618, 16
      %v620 = vadd.s32 %v619, %v617
      %vm621 = vcmp.eq.s32.totalorder %v270, %v620
      %v622 = vsel %vm621, 1, 0
      %v623 = vcvt.s32.f32 %v622
      %s624 = sadd.s32 %s30, 1
      %s625 = smul.u32 %s624, 128
      %s626 = sld [smem:[#allocation6 + %s625]]
      %v627 = vstv %s626
      %vm628 = vcmp.eq.s32.totalorder %v270, %v627
      %v629 = vsel %vm628, 1, 0
      %v630 = vcvt.s32.f32 %v629
      %s631 = sadd.s32 %s625, 1
      %s632 = sld [smem:[#allocation6 + %s631]]
      %v633 = vstv %s632
      %vm634 = vcmp.eq.s32.totalorder %v270, %v633
      %v635 = vsel %vm634, 1, 0
      %v636 = vcvt.s32.f32 %v635
      %vm637 = vcmask 1040384
      %v638 = vsel %vm637, %v630, %v636
      %s639 = sld [smem:[#allocation7 + %s624]]
      %p640 = scmp.gt.s32.totalorder %s639, 0
      %s641 = scalar_select %p640, 1, 0
      %s642 = scvt.s32.f32 %s641
      %v643 = vstv %s642
      %v644 = vmul.f32 %v643, %v638
      %s645 = ssub.f32 1.0, %s642
      %v646 = vstv %s645
      %v647 = vmul.f32 %v646, %v623
      %v648 = vadd.f32 %v644, %v647
      %649 = vst [vmem:[#allocation4] sm:$0x3] %v648
      %p650 = scmp.lt.s32.totalorder %s30, 6
      %s651 = scalar_select %p650, %s30, 6
      %s652 = smul.addr %s651, 2
      %s653 = scalar_lea.vmem %s9, %s652
      // Predicated region
      $region53: #{seq2seq_forward.3} parent=47 // pred_check
        %p654 = pneg %p195
      $region54: #{seq2seq_forward.3} parent=47 // pred_check_branch
        %656 = sbr.rel (%p654) target = $region56
      $region55: #{seq2seq_forward.3} parent=47 // pred_region
        _
      $region56: #{seq2seq_forward.3} parent=47 // pred_fallthru
        _
    $region48: #{seq2seq_forward.3} parent=5 // pred_fallthru
      _
    %p657 = scmp.le.s32.totalorder 2, %s25
    // Predicated region
    $region57: #{seq2seq_forward.3} parent=5 // pred_check
      %p658 = pneg %p657
    $region58: #{seq2seq_forward.3} parent=5 // pred_check_branch
      %660 = sbr.rel (%p658) target = $region60
    $region59: #{seq2seq_forward.3} parent=5 // pred_region
      %s661 = ssub.s32 %s25, 2
      // Predicated region
      $region61: #{seq2seq_forward.3} parent=59 // pred_check
        %p662 = pneg %p201
      $region62: #{seq2seq_forward.3} parent=59 // pred_check_branch
        %664 = sbr.rel (%p662) target = $region64
      $region63: #{seq2seq_forward.3} parent=59 // pred_region
        %p665 = scmp.lt.s32.totalorder %s31, 6
        %s666 = scalar_select %p665, %s31, 6
        %s667 = smul.addr %s666, 2
        %s668 = scalar_lea.vmem %s9, %s667
      $region64: #{seq2seq_forward.3} parent=59 // pred_fallthru
        _
    $region60: #{seq2seq_forward.3} parent=5 // pred_fallthru
      _
  $region6: #{seq2seq_forward.3} parent=0 // loop_footer
    %s29 = sadd.s32 1, %s25
  $region7: #{seq2seq_forward.3} parent=0 // loop_footer_branch
    %24 = sbr.rel target = $region3
  $region8: #{seq2seq_forward.3} parent=0 // loop_exit
    _

// kernel: seq2seq_forward.2
$region0: #{seq2seq_forward.2}
  #allocation0 [shape = 'u32[]', space=smem, size = 0x4, offset = 0x4, fixed_abs, tag = 'smem constant byte address 0x4 - core index']
  #allocation1 [shape = 'u32[144,128]{1,0:T(1,128)}', space=vmem, size = 0x12000, scoped, tag = 'internal scratch']
  %s0 = inlined_call_operand.vmem [shape: f32[8,2,32], index: 0, kind: input, shape index: {}]
  %s1 = inlined_call_operand.vmem [shape: f32[64,128], index: 1, kind: input, shape index: {}]
  %s2 = inlined_call_operand.vmem [shape: f32[1,128], index: 2, kind: input, shape index: {}]
  %s3 = inlined_call_operand.vmem [shape: f32[2,32], index: 3, kind: output, shape index: {0}]
  %s4 = inlined_call_operand.vmem [shape: f32[2,32], index: 4, kind: output, shape index: {1}]
  %5 = xla_tuple %s3, %s4
  %s6 = sld [smem:[#allocation0]]
  $region57: #{seq2seq_forward.2} parent=0
    _
  %s8 = ssub.s32 1, %s6
  %s9 = scalar_select 0, %s8, %s6
  loop: start=0, step=1, limit=10
  $region2: #{seq2seq_forward.2} parent=0 // loop_pre_header
    _
  $region3: #{seq2seq_forward.2} parent=0 // loop_header
    %s11 = sphi 0, %s15
    %p12 = scmp.ge.s32.totalorder %s11, 10
    %s21 = sphi 0, %s23
    %s24 = sphi 0, %s21
    %s25 = sphi 0, %s24
    %s41 = sphi 0, %s25
    %s45 = sphi 0, %s45
    %s47 = sphi 0, %s45
    %s48 = sphi 0, %s47
    %s62 = sphi 0, %s48
    %s66 = sphi 0, %s66
    %s68 = sphi 0, %s66
    %s69 = sphi 0, %s68
    %s83 = sphi 0, %s69
    %s87 = sphi 0, %s87
    %s89 = sphi 0, %s87
    %s90 = sphi 0, %s89
    %s104 = sphi 0, %s90
    %s108 = sphi 0, %s108
    %s110 = sphi 0, %s108
    %s111 = sphi 0, %s110
    %s125 = sphi 0, %s111
  $region4: #{seq2seq_forward.2} parent=0 // loop_header_branch
    %14 = sbr.rel (%p12) target = $region8
  $region5: #{seq2seq_forward.2} parent=0 // loop_body
    %s16 = ssub.s32 %s11, 1
    %s17 = ssub.s32 %s11, 2
    %s18 = sadd.s32 %s11, 1
    %s19 = ssub.s32 %s11, %s18
    %p20 = scmp.eq.s32.totalorder %s19, 0
    %s22 = sadd.s32 %s21, 1
    %s23 = scalar_select %p20, %s21, %s22
    %p26 = pneg %p20
    %p27 = scmp.eq.s32.totalorder %s11, 7
    %p28 = por %p26, %p27
    %p29 = scmp.ne.s32.totalorder %s21, %s24
    %p30 = scmp.eq.s32.totalorder %s11, 0
    %p31 = por %p29, %p30
    %p32 = scmp.ne.s32.totalorder %s21, %s24
    %p33 = scmp.eq.s32.totalorder %s16, 7
    %p34 = por %p32, %p33
    %p35 = scmp.ne.s32.totalorder %s24, %s25
    %p36 = scmp.eq.s32.totalorder %s16, 0
    %p37 = por %p35, %p36
    %p38 = scmp.ne.s32.totalorder %s24, %s25
    %p39 = scmp.eq.s32.totalorder %s17, 7
    %p40 = por %p38, %p39
    %p42 = scmp.ne.s32.totalorder %s25, %s41
    %p43 = scmp.eq.s32.totalorder %s17, 0
    %p44 = por %p42, %p43
    %s46 = sadd.s32 %s45, 1
    %p49 = scmp.eq.s32.totalorder %s11, 7
    %p50 = scmp.ne.s32.totalorder %s45, %s47
    %p51 = scmp.eq.s32.totalorder %s11, 0
    %p52 = por %p50, %p51
    %p53 = scmp.ne.s32.totalorder %s45, %s47
    %p54 = scmp.eq.s32.totalorder %s16, 7
    %p55 = por %p53, %p54
    %p56 = scmp.ne.s32.totalorder %s47, %s48
    %p57 = scmp.eq.s32.totalorder %s16, 0
    %p58 = por %p56, %p57
    %p59 = scmp.ne.s32.totalorder %s47, %s48
    %p60 = scmp.eq.s32.totalorder %s17, 7
    %p61 = por %p59, %p60
    %p63 = scmp.ne.s32.totalorder %s48, %s62
    %p64 = scmp.eq.s32.totalorder %s17, 0
    %p65 = por %p63, %p64
    %s67 = sadd.s32 %s66, 1
    %p70 = scmp.eq.s32.totalorder %s11, 7
    %p71 = scmp.ne.s32.totalorder %s66, %s68
    %p72 = scmp.eq.s32.totalorder %s11, 0
    %p73 = por %p71, %p72
    %p74 = scmp.ne.s32.totalorder %s66, %s68
    %p75 = scmp.eq.s32.totalorder %s16, 7
    %p76 = por %p74, %p75
    %p77 = scmp.ne.s32.totalorder %s68, %s69
    %p78 = scmp.eq.s32.totalorder %s16, 0
    %p79 = por %p77, %p78
    %p80 = scmp.ne.s32.totalorder %s68, %s69
    %p81 = scmp.eq.s32.totalorder %s17, 7
    %p82 = por %p80, %p81
    %p84 = scmp.ne.s32.totalorder %s69, %s83
    %p85 = scmp.eq.s32.totalorder %s17, 0
    %p86 = por %p84, %p85
    %s88 = sadd.s32 %s87, 1
    %p91 = scmp.eq.s32.totalorder %s11, 7
    %p92 = scmp.ne.s32.totalorder %s87, %s89
    %p93 = scmp.eq.s32.totalorder %s11, 0
    %p94 = por %p92, %p93
    %p95 = scmp.ne.s32.totalorder %s87, %s89
    %p96 = scmp.eq.s32.totalorder %s16, 7
    %p97 = por %p95, %p96
    %p98 = scmp.ne.s32.totalorder %s89, %s90
    %p99 = scmp.eq.s32.totalorder %s16, 0
    %p100 = por %p98, %p99
    %p101 = scmp.ne.s32.totalorder %s89, %s90
    %p102 = scmp.eq.s32.totalorder %s17, 7
    %p103 = por %p101, %p102
    %p105 = scmp.ne.s32.totalorder %s90, %s104
    %p106 = scmp.eq.s32.totalorder %s17, 0
    %p107 = por %p105, %p106
    %s109 = sadd.s32 %s108, 1
    %p112 = scmp.eq.s32.totalorder %s11, 7
    %p113 = scmp.ne.s32.totalorder %s108, %s110
    %p114 = scmp.eq.s32.totalorder %s11, 0
    %p115 = por %p113, %p114
    %p116 = scmp.ne.s32.totalorder %s108, %s110
    %p117 = scmp.eq.s32.totalorder %s16, 7
    %p118 = por %p116, %p117
    %p119 = scmp.ne.s32.totalorder %s110, %s111
    %p120 = scmp.eq.s32.totalorder %s16, 0
    %p121 = por %p119, %p120
    %p122 = scmp.ne.s32.totalorder %s110, %s111
    %p123 = scmp.eq.s32.totalorder %s17, 7
    %p124 = por %p122, %p123
    %p126 = scmp.ne.s32.totalorder %s111, %s125
    %p127 = scmp.eq.s32.totalorder %s17, 0
    %p128 = por %p126, %p127
    %p129 = scmp.le.s32.totalorder 1, %s11
    %p130 = scmp.lt.s32.totalorder %s11, 9
    %p131 = pnand %p129, %p130
    %p132 = pneg %p131
    // Predicated region
    $region9: #{seq2seq_forward.2} parent=5 // pred_check
      _
    $region10: #{seq2seq_forward.2} parent=5 // pred_check_branch
      %134 = sbr.rel (%p131) target = $region12
    $region11: #{seq2seq_forward.2} parent=5 // pred_region
      %s135 = ssub.s32 %s11, 1
      // Predicated region
      $region13: #{seq2seq_forward.2} parent=11 // pred_check
        %p136 = pneg %p58
      $region14: #{seq2seq_forward.2} parent=11 // pred_check_branch
        %138 = sbr.rel (%p136) target = $region16
      $region15: #{seq2seq_forward.2} parent=11 // pred_region
        _
      $region16: #{seq2seq_forward.2} parent=11 // pred_fallthru
        _
      // Predicated region
      $region17: #{seq2seq_forward.2} parent=11 // pred_check
        %p139 = pneg %p79
      $region18: #{seq2seq_forward.2} parent=11 // pred_check_branch
        %141 = sbr.rel (%p139) target = $region20
      $region19: #{seq2seq_forward.2} parent=11 // pred_region
        _
      $region20: #{seq2seq_forward.2} parent=11 // pred_fallthru
        _
    $region12: #{seq2seq_forward.2} parent=5 // pred_fallthru
      _
    %p142 = scmp.lt.s32.totalorder %s11, 8
    // Predicated region
    $region21: #{seq2seq_forward.2} parent=5 // pred_check
      %p143 = pneg %p142
    $region22: #{seq2seq_forward.2} parent=5 // pred_check_branch
      %145 = sbr.rel (%p143) target = $region24
    $region23: #{seq2seq_forward.2} parent=5 // pred_region
      // Predicated region
      $region25: #{seq2seq_forward.2} parent=23 // pred_check
        %p146 = pneg %p31
      $region26: #{seq2seq_forward.2} parent=23 // pred_check_branch
        %148 = sbr.rel (%p146) target = $region28
      $region27: #{seq2seq_forward.2} parent=23 // pred_region
        %p149 = scmp.lt.s32.totalorder %s11, 7
        %s150 = scalar_select %p149, %s11, 7
        %s151 = smul.addr %s150, 2
        %s152 = scalar_lea.vmem %s0, %s151
      $region28: #{seq2seq_forward.2} parent=23 // pred_fallthru
        _
    $region24: #{seq2seq_forward.2} parent=5 // pred_fallthru
      _
    %p153 = scmp.le.s32.totalorder 1, %s11
    %p154 = scmp.lt.s32.totalorder %s11, 9
    %p155 = pnand %p153, %p154
    %p156 = pneg %p155
    // Predicated region
    $region29: #{seq2seq_forward.2} parent=5 // pred_check
      _
    $region30: #{seq2seq_forward.2} parent=5 // pred_check_branch
      %158 = sbr.rel (%p155) target = $region32
    $region31: #{seq2seq_forward.2} parent=5 // pred_region
      %s159 = ssub.s32 %s11, 1
      %p160 = scmp.lt.s32.totalorder %s16, 7
      %s161 = scalar_select %p160, %s16, 7
      %s162 = smul.addr %s161, 2
      %s163 = scalar_lea.vmem %s0, %s162
      %p164 = pneg %p37
      %p165 = pneg %p34
      %p166 = pneg %p58
      %p167 = pneg %p55
      %p168 = pneg %p79
      %p169 = pneg %p76
      %p170 = pneg %p100
      %p171 = pneg %p97
      %p172 = pneg %p121
      %p173 = pneg %p118
      %p174 = scmp.lt.s32.totalorder %s16, 7
      %s175 = scalar_select %p174, %s16, 7
      %s176 = smul.addr %s175, 2
      %s177 = scalar_lea.vmem %s0, %s176
      %p178 = scmp.eq.s32.totalorder %s16, 0
      // Predicated region
      $region33: #{seq2seq_forward.2} parent=31 // pred_check
        %p179 = pneg %p178
      $region34: #{seq2seq_forward.2} parent=31 // pred_check_branch
        %181 = sbr.rel (%p179) target = $region36
      $region35: #{seq2seq_forward.2} parent=31 // pred_region
        %vm182 = vcmask 254976
        %183 = vst.msk [vmem:[%s3] sm:$0x3] %vm182, 0.0
        %184 = vst.msk [vmem:[%s4] sm:$0x3] %vm182, 0.0
      $region36: #{seq2seq_forward.2} parent=31 // pred_fallthru
        _
      %v185 = vld [vmem:[%s177] sm:$0x3]
      %v186 = vld [vmem:[%s3] sm:$0x3]
      %v187 = vld [vmem:[%s4] sm:$0x3]
      %189 = vrot.lane.b32.xlu0 %v186, 32
      %v190 = vpop.permute.xlu0 %189
      %vm192 = vcmask 261120
      %v193 = vsel %vm192, %v185, %v190
      %v194 = vld [vmem:[%s1] sm:$0xff]
      %v195 = vld [vmem:[%s1 + $0x8] sm:$0xff]
      %v196 = vld [vmem:[%s1 + $0x10] sm:$0xff]
      %v197 = vld [vmem:[%s1 + $0x18] sm:$0xff]
      %v198 = vld [vmem:[%s1 + $0x20] sm:$0xff]
      %v199 = vld [vmem:[%s1 + $0x28] sm:$0xff]
      %v200 = vld [vmem:[%s1 + $0x30] sm:$0xff]
      %v201 = vld [vmem:[%s1 + $0x38] sm:$0xff]
      %v202 = vld [vmem:[%s2] sm:$0x1]
      %v204 = vlaneseq
      %v205 = vshrl.u32 %v204, 7
      %v206 = vsub.s32 0, %v205
      %v207 = vrot.slane %v202, %v206
      %vm209 = vcmask 523264
      %v211 = vsel %vm209, %v193, 0
      %213 = vmatprep.subr.mxu0 0.0
      %214 = vmatpush1.msra.mxu0 0.0
      %215 = vmatprep.subr.mxu0 0.0
      %216 = vmatpush1.msra.mxu0 0.0
      %217 = vmatprep.subr.mxu0 0.0
      %218 = vmatpush1.msra.mxu0 0.0
      %219 = vmatprep.subr.mxu0 0.0
      %220 = vmatpush1.msra.mxu0 0.0
      %221 = vmatprep.subr.mxu0 0.0
      %222 = vmatpush1.msra.mxu0 0.0
      %223 = vmatprep.subr.mxu0 0.0
      %224 = vmatpush1.msra.mxu0 0.0
      %225 = vmatprep.subr.mxu0 0.0
      %226 = vmatpush1.msra.mxu0 0.0
      %227 = vmatprep.subr.mxu0 0.0
      %228 = vmatpush1.msra.mxu0 0.0
      %229 = vmatprep.subr.mxu0 0.0
      %230 = vmatpush1.msra.mxu0 %v201
      %231 = vmatprep.subr.mxu0 0.0
      %232 = vmatpush1.msra.mxu0 %v200
      %233 = vmatprep.subr.mxu0 0.0
      %234 = vmatpush1.msra.mxu0 %v199
      %235 = vmatprep.subr.mxu0 0.0
      %236 = vmatpush1.msra.mxu0 %v198
      %237 = vmatprep.subr.mxu0 0.0
      %238 = vmatpush1.msra.mxu0 %v197
      %239 = vmatprep.subr.mxu0 0.0
      %240 = vmatpush1.msra.mxu0 %v196
      %241 = vmatprep.subr.mxu0 0.0
      %242 = vmatpush1.msra.mxu0 %v195
      %243 = vmatprep.subr.mxu0 0.0
      %244 = vmatpush1.msra.mxu0 %v194
      %245 = vmatprep.subr.mxu0 0.0
      %246 = vmatpush2.msra.mxu0 0.0
      %247 = vmatprep.subr.mxu0 0.0
      %248 = vmatpush2.msra.mxu0 0.0
      %249 = vmatprep.subr.mxu0 0.0
      %250 = vmatpush2.msra.mxu0 0.0
      %251 = vmatprep.subr.mxu0 0.0
      %252 = vmatpush2.msra.mxu0 0.0
      %253 = vmatprep.subr.mxu0 0.0
      %254 = vmatpush2.msra.mxu0 0.0
      %255 = vmatprep.subr.mxu0 0.0
      %256 = vmatpush2.msra.mxu0 0.0
      %257 = vmatprep.subr.mxu0 0.0
      %258 = vmatpush2.msra.mxu0 0.0
      %259 = vmatprep.subr.mxu0 0.0
      %260 = vmatpush2.msra.mxu0 0.0
      %261 = vmatprep.subr.mxu0 0.0
      %262 = vmatpush2.msra.mxu0 0.0
      %263 = vmatprep.subr.mxu0 0.0
      %264 = vmatpush2.msra.mxu0 0.0
      %265 = vmatprep.subr.mxu0 0.0
      %266 = vmatpush2.msra.mxu0 0.0
      %267 = vmatprep.subr.mxu0 0.0
      %268 = vmatpush2.msra.mxu0 0.0
      %269 = vmatprep.subr.mxu0 0.0
      %270 = vmatpush2.msra.mxu0 0.0
      %271 = vmatprep.subr.mxu0 0.0
      %272 = vmatpush2.msra.mxu0 0.0
      %273 = vmatprep.subr.mxu0 0.0
      %274 = vmatpush2.msra.mxu0 0.0
      %275 = vmatprep.subr.mxu0 0.0
      %276 = vmatpush2.msra.mxu0 0.0
      %277 = vmatprep.mubr.f32.mxu0 0.0
      %278 = vmatmul.mubr.f32.gmra.mxu0 %v211
      %v279 = vpop.f32.mrf.mxu0
      %v280 = vadd.f32 %v207, %v279
      %v281 = vpop.f32.mrf.mxu0
      %282 = vdwg.mxu0
      %v283 = vxor.u32 %v280, 2147483648
      %v284 = vmul.f32 %v283, 1.442695
      %v285 = vpow.pop %v284
      %v286 = vadd.f32 %v285, 1.0
      %v287 = vrcp.pop %v286
      %v288 = vmul.f32 1.0, %v287
      %v289 = vtanh.pop %v280
      %291 = vrot.lane.b32.xlu0 %v187, 32
      %v292 = vpop.permute.xlu0 %291
      %v294 = vmul.f32 %v288, %v292
      %296 = vrot.lane.b32.xlu0 %v289, 64
      %v297 = vpop.permute.xlu0 %296
      %v299 = vmul.f32 %v288, %v297
      %301 = vrot.lane.b32.xlu0 %v299, 32
      %v302 = vpop.permute.xlu0 %301
      %v304 = vadd.f32 %v294, %v302
      %v305 = vtanh.pop %v304
      %307 = vrot.lane.b32.xlu0 %v305, 64
      %v308 = vpop.permute.xlu0 %307
      %v310 = vmul.f32 %v288, %v308
      %312 = vrot.lane.b32.xlu0 %v304, 96
      %v313 = vpop.permute.xlu0 %312
      %vm315 = vcmask 254976
      %316 = vst.msk [vmem:[%s4] sm:$0x3] %vm315, %v313
      %318 = vrot.lane.b32.xlu0 %v310, 32
      %v319 = vpop.permute.xlu0 %318
      %321 = vst.msk [vmem:[%s3] sm:$0x3] %vm315, %v319
      // Predicated region
      $region37: #{seq2seq_forward.2} parent=31 // pred_check
        %p322 = pneg %p97
      $region38: #{seq2seq_forward.2} parent=31 // pred_check_branch
        %324 = sbr.rel (%p322) target = $region40
      $region39: #{seq2seq_forward.2} parent=31 // pred_region
        _
      $region40: #{seq2seq_forward.2} parent=31 // pred_fallthru
        _
      // Predicated region
      $region41: #{seq2seq_forward.2} parent=31 // pred_check
        %p325 = pneg %p118
      $region42: #{seq2seq_forward.2} parent=31 // pred_check_branch
        %327 = sbr.rel (%p325) target = $region44
      $region43: #{seq2seq_forward.2} parent=31 // pred_region
        _
      $region44: #{seq2seq_forward.2} parent=31 // pred_fallthru
        _
      // Predicated region
      $region45: #{seq2seq_forward.2} parent=31 // pred_check
        %p328 = pneg %p97
      $region46: #{seq2seq_forward.2} parent=31 // pred_check_branch
        %330 = sbr.rel (%p328) target = $region48
      $region47: #{seq2seq_forward.2} parent=31 // pred_region
        _
      $region48: #{seq2seq_forward.2} parent=31 // pred_fallthru
        _
      // Predicated region
      $region49: #{seq2seq_forward.2} parent=31 // pred_check
        %p331 = pneg %p118
      $region50: #{seq2seq_forward.2} parent=31 // pred_check_branch
        %333 = sbr.rel (%p331) target = $region52
      $region51: #{seq2seq_forward.2} parent=31 // pred_region
        _
      $region52: #{seq2seq_forward.2} parent=31 // pred_fallthru
        _
    $region32: #{seq2seq_forward.2} parent=5 // pred_fallthru
      _
    %p334 = scmp.le.s32.totalorder 2, %s11
    // Predicated region
    $region53: #{seq2seq_forward.2} parent=5 // pred_check
      %p335 = pneg %p334
    $region54: #{seq2seq_forward.2} parent=5 // pred_check_branch
      %337 = sbr.rel (%p335) target = $region56
    $region55: #{seq2seq_forward.2} parent=5 // pred_region
      %s338 = ssub.s32 %s11, 2
    $region56: #{seq2seq_forward.2} parent=5 // pred_fallthru
      _
  $region6: #{seq2seq_forward.2} parent=0 // loop_footer
    %s15 = sadd.s32 1, %s11
  $region7: #{seq2seq_forward.2} parent=0 // loop_footer_branch
    %10 = sbr.rel target = $region3
  $region8: #{seq2seq_forward.2} parent=0 // loop_exit
    _

</llo_original>
